<compile_context>
chip_gen: v7x
topology: tpu7x:2x2x1
jax: 0.10.0
libtpu: 0.0.40
codegen_flags: <defaults>
</compile_context>

<pallas_src>
import math
import functools
import numpy as np
import jax
import jax.numpy as jnp
from jax.experimental import pallas as pl
from jax.experimental.pallas import tpu as pltpu

EPS = 1e-6  # RMSNorm epsilon


def _rmsnorm(x, w):
    ms = jnp.mean(x * x, axis=-1, keepdims=True)
    return x * jax.lax.rsqrt(ms + EPS) * w


# ----------------------------- Pallas kernel -------------------------------

def _transformer_kernel(x_ref, rope_ref, mask_ref,
                        wqkv_ref, wo_ref, w13_ref, w2_ref, norms_ref,
                        fnorm_ref, vocab_ref,
                        logits_ref, resid_ref,
                        *, num_heads, head_dim, hidden_dim):
    """One grid step == one transformer block; grid = (num_layers,)."""
    l = pl.program_id(0)
    D = num_heads * head_dim
    Hm = hidden_dim

    @pl.when(l == 0)
    def _():                             # load the residual stream once
        resid_ref[...] = x_ref[...]

    x = resid_ref[...]                   # (R, D) f32, VMEM-resident across layers
    cos, sin_a, sin_b = rope_ref[0], rope_ref[1], rope_ref[2]   # (R, D) each
    mask_add = mask_ref[...]             # (R, R) additive block-diag causal mask
    norms = norms_ref[...]               # (1, 2, D) f32
    wo = wo_ref[0]                       # (D, D) bf16

    # ---------------- attention sub-block ----------------
    xn = _rmsnorm(x, norms[0, 0]).astype(jnp.bfloat16)
    qkv = jnp.dot(xn, wqkv_ref[0], preferred_element_type=jnp.float32)   # (R, 3D) f32
    q = qkv[:, :D] * jnp.float32(1.0 / math.sqrt(head_dim))              # fold scale once
    k = qkv[:, D:2 * D]
    v = qkv[:, 2 * D:].astype(jnp.bfloat16)

    # Full-width interleaved-pair RoPE: pre-signed sin tables are zero on the lanes that
    # would leak across head boundaries, so two D-wide rolls handle all heads at once.
    q = (q * cos + jnp.roll(q, -1, axis=-1) * sin_a
         + jnp.roll(q, 1, axis=-1) * sin_b).astype(jnp.bfloat16)
    k = (k * cos + jnp.roll(k, -1, axis=-1) * sin_a
         + jnp.roll(k, 1, axis=-1) * sin_b).astype(jnp.bfloat16)

    attn = jnp.zeros(x.shape, jnp.float32)          # full-width f32 accumulator
    for h in range(num_heads):                      # static unroll; Wo folded per head
        lo = h * head_dim
        s = jax.lax.dot_general(q[:, lo:lo + head_dim], k[:, lo:lo + head_dim],
                                (((1,), (1,)), ((), ())),
                                preferred_element_type=jnp.float32)      # (R, R) f32
        s = s + mask_add
        m = jnp.max(s, axis=-1, keepdims=True)
        e = jnp.exp(s - m)
        p = (e / jnp.sum(e, axis=-1, keepdims=True)).astype(jnp.bfloat16)  # exact softmax
        pv = jnp.dot(p, v[:, lo:lo + head_dim], preferred_element_type=jnp.float32)
        attn = attn + jnp.dot(pv.astype(jnp.bfloat16), wo[lo:lo + head_dim, :],
                              preferred_element_type=jnp.float32)        # (R, D)
    x = x + attn

    # ---------------- GLU feed-forward: w2( silu(w1 x) * (w3 x) ) ----------------
    xn2 = _rmsnorm(x, norms[0, 1]).astype(jnp.bfloat16)
    h13 = jnp.dot(xn2, w13_ref[0], preferred_element_type=jnp.float32)   # (R, 2*Hm), lane-dense
    h1 = h13[:, :Hm]
    h3 = h13[:, Hm:]
    g = (h1 * (1.0 / (1.0 + jnp.exp(-h1)))) * h3                         # silu in f32
    x = x + jnp.dot(g.astype(jnp.bfloat16), w2_ref[0],
                    preferred_element_type=jnp.float32)
    resid_ref[...] = x

    # fused head: final RMSNorm + vocab projection on the last layer step
    @pl.when(l == pl.num_programs(0) - 1)
    def _():
        xn_f = _rmsnorm(x, fnorm_ref[...]).astype(jnp.bfloat16)
        logits_ref[...] = jnp.dot(xn_f, vocab_ref[...],
                                  preferred_element_type=jnp.float32)


# ------------------------------ wrappers -----------------------------------

def run_transformer(x, rope, mask_add, params, *, num_heads, head_dim):
    st = params['stacked']
    R, D = x.shape
    L = st['wqkv'].shape[0]
    Hm = st['w2'].shape[1]
    V = params['vocab_w'].shape[1]
    kern = functools.partial(_transformer_kernel, num_heads=num_heads,
                             head_dim=head_dim, hidden_dim=Hm)
    return pl.pallas_call(
        kern,
        out_shape=jax.ShapeDtypeStruct((R, V), jnp.float32),
        grid=(L,),
        in_specs=[
            pl.BlockSpec((R, D), lambda l: (0, 0)),            # token embeddings (l==0 only)
            pl.BlockSpec((3, R, D), lambda l: (0, 0, 0)),      # rope cos / sin_a / sin_b
            pl.BlockSpec((R, R), lambda l: (0, 0)),            # additive causal mask
            pl.BlockSpec((1, D, 3 * D), lambda l: (l, 0, 0)),  # fused Wq|Wk|Wv
            pl.BlockSpec((1, D, D), lambda l: (l, 0, 0)),      # Wo
            pl.BlockSpec((1, D, 2 * Hm), lambda l: (l, 0, 0)), # fused W1|W3
            pl.BlockSpec((1, Hm, D), lambda l: (l, 0, 0)),     # W2
            pl.BlockSpec((1, 2, D), lambda l: (l, 0, 0)),      # norm1 / norm2 weights
            pl.BlockSpec((1, D), lambda l: (0, 0)),            # final norm weight
            pl.BlockSpec((D, V), lambda l: (0, 0)),            # vocab projection
        ],
        out_specs=pl.BlockSpec((R, V), lambda l: (0, 0)),
        scratch_shapes=[pltpu.VMEM((R, D), jnp.float32)],      # residual stream
        compiler_params=pltpu.CompilerParams(
            dimension_semantics=("arbitrary",)),
    )(x, rope, mask_add,
      st['wqkv'], st['wo'], st['w13'], st['w2'], st['norms'],
      params['norm_w'], params['vocab_w'])


def transformer_forward(tokens, params, rope, mask_add, *, num_heads, head_dim):
    B, S = tokens.shape
    D = num_heads * head_dim
    # embedding lookup: plain-JAX gather glue (table indexing, not a hot matmul)
    x = params['emb'][tokens].astype(jnp.float32).reshape(B * S, D)
    logits = run_transformer(x, rope, mask_add, params,
                             num_heads=num_heads, head_dim=head_dim)
    return logits.reshape(B, S, -1)


# --------------------------- params / rope setup ----------------------------

def init_params(key, cfg):
    V, D, Hm, L = cfg['vocab_size'], cfg['d_model'], cfg['hidden_dim'], cfg['num_layers']
    keys = iter(jax.random.split(key, 2 + L * 7))

    def nrm(k, shape):  # matches torch init: normal(mean=0, std=0.02)
        return 0.02 * jax.random.normal(k, shape, jnp.float32)

    emb = nrm(next(keys), (V, D))
    vocab_w = nrm(next(keys), (D, V))

    wqkv, wo, w13, w2 = [], [], [], []
    for _ in range(L):
        wq = nrm(next(keys), (D, D))
        wk = nrm(next(keys), (D, D))
        wv = nrm(next(keys), (D, D))
        wo_l = nrm(next(keys), (D, D))
        w1 = nrm(next(keys), (D, Hm))
        w2_l = nrm(next(keys), (Hm, D))
        w3 = nrm(next(keys), (D, Hm))
        wqkv.append(jnp.concatenate([wq, wk, wv], axis=-1))
        wo.append(wo_l)
        w13.append(jnp.concatenate([w1, w3], axis=-1))
        w2.append(w2_l)

    stacked = {
        'wqkv': jnp.stack(wqkv).astype(jnp.bfloat16),   # (L, D, 3D)
        'wo': jnp.stack(wo).astype(jnp.bfloat16),       # (L, D, D)
        'w13': jnp.stack(w13).astype(jnp.bfloat16),     # (L, D, 2*Hm)
        'w2': jnp.stack(w2).astype(jnp.bfloat16),       # (L, Hm, D)
        'norms': jnp.ones((L, 2, D), jnp.float32),      # RMSNorm weights (norm1, norm2)
    }
    return {'emb': emb,
            'vocab_w': vocab_w.astype(jnp.bfloat16),
            'norm_w': jnp.ones((1, D), jnp.float32),
            'stacked': stacked}


def rope_tables(head_dim, seq_len, theta=10000.0):
    """cos / pre-signed sin tables, shape (seq, head_dim), interleaved-pair convention."""
    freqs = 1.0 / (theta ** (np.arange(0, head_dim, 2)[: head_dim // 2]
                             .astype(np.float32) / head_dim))
    t = np.arange(seq_len, dtype=np.float32)
    ang = np.outer(t, freqs)                          # (S, hd/2)
    cos = np.repeat(np.cos(ang), 2, axis=-1)          # cos_j at lanes 2j, 2j+1
    sin = np.repeat(np.sin(ang), 2, axis=-1)
    even = (np.arange(head_dim) % 2 == 0)
    sin_a = np.where(even, -sin, 0.0).astype(np.float32)   # multiplies roll(x,-1) == x[i+1]
    sin_b = np.where(even, 0.0, sin).astype(np.float32)    # multiplies roll(x,+1) == x[i-1]
    return cos.astype(np.float32), sin_a, sin_b


def build_kernel_aux(cos, sin_a, sin_b, batch, num_heads, seq_len):
    """Tile rope tables to (B*S, D), stack into (3, B*S, D); build the additive
    block-diagonal causal mask (B*S, B*S) once on the host."""
    def tile_full(t):
        return np.tile(np.tile(t, (1, num_heads)), (batch, 1))   # (B*S, D)
    rope = np.stack([tile_full(cos), tile_full(sin_a), tile_full(sin_b)], axis=0)
    R = batch * seq_len
    r = np.arange(R)
    same_b = (r[:, None] // seq_len) == (r[None, :] // seq_len)
    causal = (r[None, :] % seq_len) <= (r[:, None] % seq_len)
    mask_add = np.where(same_b & causal, 0.0, -1e30).astype(np.float32)
    return jnp.asarray(rope.astype(np.float32)), jnp.asarray(mask_add)


# ------------------------------ pure-JAX ref --------------------------------
# Mirrors the kernel's mixed precision (bf16 matmul inputs, f32 accumulation) so the
# comparison isolates the Pallas implementation, not the bf16 quantization choice.

def ref_forward(tokens, params, cos, sin_a, sin_b, *, num_heads, head_dim):
    x = params['emb'][tokens].astype(jnp.float32)
    B, S, D = x.shape
    st = params['stacked']
    L = st['wqkv'].shape[0]
    Hm = st['w2'].shape[1]
    scale = 1.0 / math.sqrt(head_dim)
    causal = jnp.tril(jnp.ones((S, S), bool))
    cos_f = jnp.tile(cos, (1, num_heads))
    sa_f = jnp.tile(sin_a, (1, num_heads))
    sb_f = jnp.tile(sin_b, (1, num_heads))

    for l in range(L):
        wqkv = st['wqkv'][l]
        wq, wk, wv = wqkv[:, :D], wqkv[:, D:2 * D], wqkv[:, 2 * D:]
        w13 = st['w13'][l]
        w1, w3 = w13[:, :Hm], w13[:, Hm:]
        n1, n2 = st['norms'][l, 0], st['norms'][l, 1]

        xn = _rmsnorm(x, n1).astype(jnp.bfloat16)
        q = jnp.dot(xn, wq, preferred_element_type=jnp.float32) * scale
        k = jnp.dot(xn, wk, preferred_element_type=jnp.float32)
        v = jnp.dot(xn, wv, preferred_element_type=jnp.float32)
        q = q * cos_f + jnp.roll(q, -1, axis=-1) * sa_f + jnp.roll(q, 1, axis=-1) * sb_f
        k = k * cos_f + jnp.roll(k, -1, axis=-1) * sa_f + jnp.roll(k, 1, axis=-1) * sb_f
        qh = q.reshape(B, S, num_heads, head_dim).transpose(0, 2, 1, 3).astype(jnp.bfloat16)
        kh = k.reshape(B, S, num_heads, head_dim).transpose(0, 2, 1, 3).astype(jnp.bfloat16)
        vh = v.reshape(B, S, num_heads, head_dim).transpose(0, 2, 1, 3).astype(jnp.bfloat16)
        s = jnp.einsum('bhqd,bhkd->bhqk', qh, kh, preferred_element_type=jnp.float32)
        s = jnp.where(causal, s, -1e30)
        p = jax.nn.softmax(s, axis=-1)
        o = jnp.einsum('bhqk,bhkd->bhqd', p.astype(jnp.bfloat16), vh,
                       preferred_element_type=jnp.float32)
        o = o.transpose(0, 2, 1, 3).reshape(B, S, D)
        x = x + jnp.dot(o.astype(jnp.bfloat16), st['wo'][l],
                        preferred_element_type=jnp.float32)

        xn2 = _rmsnorm(x, n2).astype(jnp.bfloat16)
        h1 = jnp.dot(xn2, w1, preferred_element_type=jnp.float32)
        h3 = jnp.dot(xn2, w3, preferred_element_type=jnp.float32)
        g = jax.nn.silu(h1) * h3
        x = x + jnp.dot(g.astype(jnp.bfloat16), st['w2'][l],
                        preferred_element_type=jnp.float32)

    xn = _rmsnorm(x, params['norm_w']).astype(jnp.bfloat16)
    return jnp.dot(xn, params['vocab_w'], preferred_element_type=jnp.float32)


# ---------------------------------- main -------------------------------------

if __name__ == "__main__":
    cfg = dict(vocab_size=64, seq_len=8, d_model=32, hidden_dim=64,
               num_heads=4, num_layers=2)
    head_dim = cfg['d_model'] // cfg['num_heads']
    B, S = 2, cfg['seq_len']

    key = jax.random.PRNGKey(0)
    pkey, tkey = jax.random.split(key)
    params = init_params(pkey, cfg)
    cos_np, sina_np, sinb_np = rope_tables(head_dim, S)
    rope, mask_add = build_kernel_aux(cos_np, sina_np, sinb_np, B, cfg['num_heads'], S)
    tokens = jax.random.randint(tkey, (B, S), 0, cfg['vocab_size'])

    logits = transformer_forward(tokens, params, rope, mask_add,
                                 num_heads=cfg['num_heads'], head_dim=head_dim)
    logits = jax.block_until_ready(logits)
    assert logits.shape == (B, S, cfg['vocab_size'])

    ref = ref_forward(tokens, params,
                      jnp.asarray(cos_np), jnp.asarray(sina_np), jnp.asarray(sinb_np),
                      num_heads=cfg['num_heads'], head_dim=head_dim)
    np.testing.assert_allclose(np.asarray(logits), np.asarray(ref),
                               rtol=2e-2, atol=2e-3)
    print("KERNEL_OK")
</pallas_src>

<mosaic_0001>
module attributes {stable_mosaic.version = 11 : i64} {
  func.func @_transformer_kernel(%arg0: i32, %arg1: memref<16x32xf32, #tpu.memory_space<vmem>>, %arg2: memref<3x16x32xf32, #tpu.memory_space<vmem>>, %arg3: memref<16x16xf32, #tpu.memory_space<vmem>>, %arg4: memref<1x32x96xbf16, #tpu.memory_space<vmem>>, %arg5: memref<1x32x32xbf16, #tpu.memory_space<vmem>>, %arg6: memref<1x32x128xbf16, #tpu.memory_space<vmem>>, %arg7: memref<1x64x32xbf16, #tpu.memory_space<vmem>>, %arg8: memref<1x2x32xf32, #tpu.memory_space<vmem>>, %arg9: memref<1x32xf32, #tpu.memory_space<vmem>>, %arg10: memref<32x64xbf16, #tpu.memory_space<vmem>>, %arg11: memref<16x64xf32, #tpu.memory_space<vmem>>, %arg12: memref<16x32xf32, #tpu.memory_space<vmem>>) attributes {dimension_semantics = [#tpu.dimension_semantics<arbitrary>], iteration_bounds = array<i64: 2>, scalar_prefetch = 0 : i64, scratch_operands = 1 : i64, tpu.core_type = #tpu.core_type<tc>, window_params = [{pipeline_mode = #tpu.pipeline_mode<synchronous>, transform_indices = @transform_0, window_bounds = array<i64: 16, 32>}, {pipeline_mode = #tpu.pipeline_mode<synchronous>, transform_indices = @transform_1, window_bounds = array<i64: 3, 16, 32>}, {pipeline_mode = #tpu.pipeline_mode<synchronous>, transform_indices = @transform_2, window_bounds = array<i64: 16, 16>}, {transform_indices = @transform_3, window_bounds = array<i64: 1, 32, 96>}, {transform_indices = @transform_4, window_bounds = array<i64: 1, 32, 32>}, {transform_indices = @transform_5, window_bounds = array<i64: 1, 32, 128>}, {transform_indices = @transform_6, window_bounds = array<i64: 1, 64, 32>}, {transform_indices = @transform_7, window_bounds = array<i64: 1, 2, 32>}, {pipeline_mode = #tpu.pipeline_mode<synchronous>, transform_indices = @transform_8, window_bounds = array<i64: 1, 32>}, {pipeline_mode = #tpu.pipeline_mode<synchronous>, transform_indices = @transform_9, window_bounds = array<i64: 32, 64>}, {pipeline_mode = #tpu.pipeline_mode<synchronous>, transform_indices = @transform_10, window_bounds = array<i64: 16, 64>}]} {
    %c0_i32 = arith.constant 0 : i32
    %0 = arith.cmpi eq, %arg0, %c0_i32 : i32
    %1 = arith.extui %0 : i1 to i32
    %c0_i32_0 = arith.constant 0 : i32
    %2 = arith.cmpi ne, %1, %c0_i32_0 : i32
    scf.if %2 {
      %c0_62 = arith.constant 0 : index
      %c0_63 = arith.constant 0 : index
      %184 = vector.load %arg1[%c0_62, %c0_63] : memref<16x32xf32, #tpu.memory_space<vmem>>, vector<16x32xf32>
      %c0_64 = arith.constant 0 : index
      %c0_65 = arith.constant 0 : index
      %185 = vector.load %arg12[%c0_64, %c0_65] : memref<16x32xf32, #tpu.memory_space<vmem>>, vector<16x32xf32>
      tpu.vector_store %arg12[%c0_64, %c0_65], %184 {strides = array<i32>} : memref<16x32xf32, #tpu.memory_space<vmem>>, vector<16x32xf32>,
    } else {
    }
    %c0 = arith.constant 0 : index
    %c0_1 = arith.constant 0 : index
    %3 = vector.load %arg12[%c0, %c0_1] : memref<16x32xf32, #tpu.memory_space<vmem>>, vector<16x32xf32>
    %c0_2 = arith.constant 0 : index
    %c0_3 = arith.constant 0 : index
    %c0_4 = arith.constant 0 : index
    %4 = vector.load %arg2[%c0_2, %c0_3, %c0_4] : memref<3x16x32xf32, #tpu.memory_space<vmem>>, vector<1x16x32xf32>
    %5 = vector.shape_cast %4 : vector<1x16x32xf32> to vector<16x32xf32>
    %c1 = arith.constant 1 : index
    %c0_5 = arith.constant 0 : index
    %c0_6 = arith.constant 0 : index
    %6 = vector.load %arg2[%c1, %c0_5, %c0_6] : memref<3x16x32xf32, #tpu.memory_space<vmem>>, vector<1x16x32xf32>
    %7 = vector.shape_cast %6 : vector<1x16x32xf32> to vector<16x32xf32>
    %c2 = arith.constant 2 : index
    %c0_7 = arith.constant 0 : index
    %c0_8 = arith.constant 0 : index
    %8 = vector.load %arg2[%c2, %c0_7, %c0_8] : memref<3x16x32xf32, #tpu.memory_space<vmem>>, vector<1x16x32xf32>
    %9 = vector.shape_cast %8 : vector<1x16x32xf32> to vector<16x32xf32>
    %c0_9 = arith.constant 0 : index
    %c0_10 = arith.constant 0 : index
    %10 = vector.load %arg3[%c0_9, %c0_10] : memref<16x16xf32, #tpu.memory_space<vmem>>, vector<16x16xf32>
    %c0_11 = arith.constant 0 : index
    %c0_12 = arith.constant 0 : index
    %c0_13 = arith.constant 0 : index
    %11 = vector.load %arg8[%c0_11, %c0_12, %c0_13] : memref<1x2x32xf32, #tpu.memory_space<vmem>>, vector<1x2x32xf32>
    %c0_14 = arith.constant 0 : index
    %c0_15 = arith.constant 0 : index
    %c0_16 = arith.constant 0 : index
    %12 = vector.load %arg5[%c0_14, %c0_15, %c0_16] : memref<1x32x32xbf16, #tpu.memory_space<vmem>>, vector<1x32x32xbf16>
    %13 = vector.shape_cast %12 : vector<1x32x32xbf16> to vector<32x32xbf16>
    %14 = vector.extract_strided_slice %11 {offsets = [0, 0, 0], sizes = [1, 1, 32], strides = [1, 1, 1]} : vector<1x2x32xf32> to vector<1x1x32xf32>
    %15 = vector.shape_cast %14 : vector<1x1x32xf32> to vector<32xf32>
    %16 = arith.mulf %3, %3 : vector<16x32xf32>
    %cst = arith.constant dense<0.000000e+00> : vector<16xf32>
    %17 = vector.multi_reduction <add>, %16, %cst [1] : vector<16x32xf32> to vector<16xf32>
    %18 = vector.shape_cast %17 : vector<16xf32> to vector<16x1xf32>
    %cst_17 = arith.constant 3.200000e+01 : f32
    %19 = vector.broadcast %cst_17 : f32 to vector<16x1xf32>
    %20 = arith.divf %18, %19 : vector<16x1xf32>
    %cst_18 = arith.constant 9.99999997E-7 : f32
    %21 = vector.broadcast %cst_18 : f32 to vector<16x1xf32>
    %22 = arith.addf %20, %21 : vector<16x1xf32>
    %23 = math.rsqrt %22 : vector<16x1xf32>
    %24 = vector.broadcast %23 : vector<16x1xf32> to vector<16x32xf32>
    %25 = arith.mulf %3, %24 : vector<16x32xf32>
    %26 = vector.shape_cast %15 : vector<32xf32> to vector<1x32xf32>
    %27 = vector.broadcast %26 : vector<1x32xf32> to vector<16x32xf32>
    %28 = arith.mulf %25, %27 : vector<16x32xf32>
    %29 = arith.truncf %28 : vector<16x32xf32> to vector<16x32xbf16>
    %c0_19 = arith.constant 0 : index
    %c0_20 = arith.constant 0 : index
    %c0_21 = arith.constant 0 : index
    %30 = vector.load %arg4[%c0_19, %c0_20, %c0_21] : memref<1x32x96xbf16, #tpu.memory_space<vmem>>, vector<1x32x96xbf16>
    %31 = vector.shape_cast %30 : vector<1x32x96xbf16> to vector<32x96xbf16>
    %cst_22 = arith.constant dense<0.000000e+00> : vector<16x96xf32>
    %32 = tpu.matmul %29, %31, %cst_22 {dimension_numbers = #tpu.dot_dimension_numbers<[1], [0], [0], [1], [0, 0, 1, 1], [], []>} : vector<16x32xbf16>, vector<32x96xbf16>, vector<16x96xf32> -> vector<16x96xf32>
    %33 = vector.extract_strided_slice %32 {offsets = [0, 0], sizes = [16, 32], strides = [1, 1]} : vector<16x96xf32> to vector<16x32xf32>
    %cst_23 = arith.constant 0.353553385 : f32
    %34 = vector.broadcast %cst_23 : f32 to vector<16x32xf32>
    %35 = arith.mulf %33, %34 : vector<16x32xf32>
    %36 = vector.extract_strided_slice %32 {offsets = [0, 32], sizes = [16, 32], strides = [1, 1]} : vector<16x96xf32> to vector<16x32xf32>
    %37 = vector.extract_strided_slice %32 {offsets = [0, 64], sizes = [16, 32], strides = [1, 1]} : vector<16x96xf32> to vector<16x32xf32>
    %38 = arith.truncf %37 : vector<16x32xf32> to vector<16x32xbf16>
    %39 = arith.mulf %35, %5 : vector<16x32xf32>
    %40 = vector.extract_strided_slice %35 {offsets = [0, 1], sizes = [16, 31], strides = [1, 1]} : vector<16x32xf32> to vector<16x31xf32>
    %41 = vector.extract_strided_slice %35 {offsets = [0, 0], sizes = [16, 1], strides = [1, 1]} : vector<16x32xf32> to vector<16x1xf32>
    %42 = tpu.concatenate %40, %41 in 1 : vector<16x31xf32>, vector<16x1xf32> -> vector<16x32xf32>
    %43 = arith.mulf %42, %7 : vector<16x32xf32>
    %44 = arith.addf %39, %43 : vector<16x32xf32>
    %45 = vector.extract_strided_slice %35 {offsets = [0, 31], sizes = [16, 1], strides = [1, 1]} : vector<16x32xf32> to vector<16x1xf32>
    %46 = vector.extract_strided_slice %35 {offsets = [0, 0], sizes = [16, 31], strides = [1, 1]} : vector<16x32xf32> to vector<16x31xf32>
    %47 = tpu.concatenate %45, %46 in 1 : vector<16x1xf32>, vector<16x31xf32> -> vector<16x32xf32>
    %48 = arith.mulf %47, %9 : vector<16x32xf32>
    %49 = arith.addf %44, %48 : vector<16x32xf32>
    %50 = arith.truncf %49 : vector<16x32xf32> to vector<16x32xbf16>
    %51 = arith.mulf %36, %5 : vector<16x32xf32>
    %52 = vector.extract_strided_slice %36 {offsets = [0, 1], sizes = [16, 31], strides = [1, 1]} : vector<16x32xf32> to vector<16x31xf32>
    %53 = vector.extract_strided_slice %36 {offsets = [0, 0], sizes = [16, 1], strides = [1, 1]} : vector<16x32xf32> to vector<16x1xf32>
    %54 = tpu.concatenate %52, %53 in 1 : vector<16x31xf32>, vector<16x1xf32> -> vector<16x32xf32>
    %55 = arith.mulf %54, %7 : vector<16x32xf32>
    %56 = arith.addf %51, %55 : vector<16x32xf32>
    %57 = vector.extract_strided_slice %36 {offsets = [0, 31], sizes = [16, 1], strides = [1, 1]} : vector<16x32xf32> to vector<16x1xf32>
    %58 = vector.extract_strided_slice %36 {offsets = [0, 0], sizes = [16, 31], strides = [1, 1]} : vector<16x32xf32> to vector<16x31xf32>
    %59 = tpu.concatenate %57, %58 in 1 : vector<16x1xf32>, vector<16x31xf32> -> vector<16x32xf32>
    %60 = arith.mulf %59, %9 : vector<16x32xf32>
    %61 = arith.addf %56, %60 : vector<16x32xf32>
    %62 = arith.truncf %61 : vector<16x32xf32> to vector<16x32xbf16>
    %cst_24 = arith.constant 0.000000e+00 : f32
    %63 = vector.broadcast %cst_24 : f32 to vector<16x32xf32>
    %64 = vector.extract_strided_slice %50 {offsets = [0, 0], sizes = [16, 8], strides = [1, 1]} : vector<16x32xbf16> to vector<16x8xbf16>
    %65 = vector.extract_strided_slice %62 {offsets = [0, 0], sizes = [16, 8], strides = [1, 1]} : vector<16x32xbf16> to vector<16x8xbf16>
    %cst_25 = arith.constant dense<0.000000e+00> : vector<16x16xf32>
    %66 = tpu.matmul %64, %65, %cst_25 {dimension_numbers = #tpu.dot_dimension_numbers<[1], [1], [0], [0], [0, 0, 1, 0], [], []>} : vector<16x8xbf16>, vector<16x8xbf16>, vector<16x16xf32> -> vector<16x16xf32>
    %67 = arith.addf %66, %10 : vector<16x16xf32>
    %cst_26 = arith.constant dense<0xFF800000> : vector<16xf32>
    %68 = vector.multi_reduction <maximumf>, %67, %cst_26 [1] : vector<16x16xf32> to vector<16xf32>
    %69 = vector.shape_cast %68 : vector<16xf32> to vector<16x1xf32>
    %70 = vector.broadcast %69 : vector<16x1xf32> to vector<16x16xf32>
    %71 = arith.subf %67, %70 : vector<16x16xf32>
    %72 = math.exp %71 : vector<16x16xf32>
    %cst_27 = arith.constant dense<0.000000e+00> : vector<16xf32>
    %73 = vector.multi_reduction <add>, %72, %cst_27 [1] : vector<16x16xf32> to vector<16xf32>
    %74 = vector.shape_cast %73 : vector<16xf32> to vector<16x1xf32>
    %75 = vector.broadcast %74 : vector<16x1xf32> to vector<16x16xf32>
    %76 = arith.divf %72, %75 : vector<16x16xf32>
    %77 = arith.truncf %76 : vector<16x16xf32> to vector<16x16xbf16>
    %78 = vector.extract_strided_slice %38 {offsets = [0, 0], sizes = [16, 8], strides = [1, 1]} : vector<16x32xbf16> to vector<16x8xbf16>
    %cst_28 = arith.constant dense<0.000000e+00> : vector<16x8xf32>
    %79 = tpu.matmul %77, %78, %cst_28 {dimension_numbers = #tpu.dot_dimension_numbers<[1], [0], [0], [1], [0, 0, 1, 1], [], []>} : vector<16x16xbf16>, vector<16x8xbf16>, vector<16x8xf32> -> vector<16x8xf32>
    %80 = arith.truncf %79 : vector<16x8xf32> to vector<16x8xbf16>
    %81 = vector.extract_strided_slice %13 {offsets = [0, 0], sizes = [8, 32], strides = [1, 1]} : vector<32x32xbf16> to vector<8x32xbf16>
    %cst_29 = arith.constant dense<0.000000e+00> : vector<16x32xf32>
    %82 = tpu.matmul %80, %81, %cst_29 {dimension_numbers = #tpu.dot_dimension_numbers<[1], [0], [0], [1], [0, 0, 1, 1], [], []>} : vector<16x8xbf16>, vector<8x32xbf16>, vector<16x32xf32> -> vector<16x32xf32>
    %83 = arith.addf %63, %82 : vector<16x32xf32>
    %84 = vector.extract_strided_slice %50 {offsets = [0, 8], sizes = [16, 8], strides = [1, 1]} : vector<16x32xbf16> to vector<16x8xbf16>
    %85 = vector.extract_strided_slice %62 {offsets = [0, 8], sizes = [16, 8], strides = [1, 1]} : vector<16x32xbf16> to vector<16x8xbf16>
    %cst_30 = arith.constant dense<0.000000e+00> : vector<16x16xf32>
    %86 = tpu.matmul %84, %85, %cst_30 {dimension_numbers = #tpu.dot_dimension_numbers<[1], [1], [0], [0], [0, 0, 1, 0], [], []>} : vector<16x8xbf16>, vector<16x8xbf16>, vector<16x16xf32> -> vector<16x16xf32>
    %87 = arith.addf %86, %10 : vector<16x16xf32>
    %cst_31 = arith.constant dense<0xFF800000> : vector<16xf32>
    %88 = vector.multi_reduction <maximumf>, %87, %cst_31 [1] : vector<16x16xf32> to vector<16xf32>
    %89 = vector.shape_cast %88 : vector<16xf32> to vector<16x1xf32>
    %90 = vector.broadcast %89 : vector<16x1xf32> to vector<16x16xf32>
    %91 = arith.subf %87, %90 : vector<16x16xf32>
    %92 = math.exp %91 : vector<16x16xf32>
    %cst_32 = arith.constant dense<0.000000e+00> : vector<16xf32>
    %93 = vector.multi_reduction <add>, %92, %cst_32 [1] : vector<16x16xf32> to vector<16xf32>
    %94 = vector.shape_cast %93 : vector<16xf32> to vector<16x1xf32>
    %95 = vector.broadcast %94 : vector<16x1xf32> to vector<16x16xf32>
    %96 = arith.divf %92, %95 : vector<16x16xf32>
    %97 = arith.truncf %96 : vector<16x16xf32> to vector<16x16xbf16>
    %98 = vector.extract_strided_slice %38 {offsets = [0, 8], sizes = [16, 8], strides = [1, 1]} : vector<16x32xbf16> to vector<16x8xbf16>
    %cst_33 = arith.constant dense<0.000000e+00> : vector<16x8xf32>
    %99 = tpu.matmul %97, %98, %cst_33 {dimension_numbers = #tpu.dot_dimension_numbers<[1], [0], [0], [1], [0, 0, 1, 1], [], []>} : vector<16x16xbf16>, vector<16x8xbf16>, vector<16x8xf32> -> vector<16x8xf32>
    %100 = arith.truncf %99 : vector<16x8xf32> to vector<16x8xbf16>
    %101 = vector.extract_strided_slice %13 {offsets = [8, 0], sizes = [8, 32], strides = [1, 1]} : vector<32x32xbf16> to vector<8x32xbf16>
    %cst_34 = arith.constant dense<0.000000e+00> : vector<16x32xf32>
    %102 = tpu.matmul %100, %101, %cst_34 {dimension_numbers = #tpu.dot_dimension_numbers<[1], [0], [0], [1], [0, 0, 1, 1], [], []>} : vector<16x8xbf16>, vector<8x32xbf16>, vector<16x32xf32> -> vector<16x32xf32>
    %103 = arith.addf %83, %102 : vector<16x32xf32>
    %104 = vector.extract_strided_slice %50 {offsets = [0, 16], sizes = [16, 8], strides = [1, 1]} : vector<16x32xbf16> to vector<16x8xbf16>
    %105 = vector.extract_strided_slice %62 {offsets = [0, 16], sizes = [16, 8], strides = [1, 1]} : vector<16x32xbf16> to vector<16x8xbf16>
    %cst_35 = arith.constant dense<0.000000e+00> : vector<16x16xf32>
    %106 = tpu.matmul %104, %105, %cst_35 {dimension_numbers = #tpu.dot_dimension_numbers<[1], [1], [0], [0], [0, 0, 1, 0], [], []>} : vector<16x8xbf16>, vector<16x8xbf16>, vector<16x16xf32> -> vector<16x16xf32>
    %107 = arith.addf %106, %10 : vector<16x16xf32>
    %cst_36 = arith.constant dense<0xFF800000> : vector<16xf32>
    %108 = vector.multi_reduction <maximumf>, %107, %cst_36 [1] : vector<16x16xf32> to vector<16xf32>
    %109 = vector.shape_cast %108 : vector<16xf32> to vector<16x1xf32>
    %110 = vector.broadcast %109 : vector<16x1xf32> to vector<16x16xf32>
    %111 = arith.subf %107, %110 : vector<16x16xf32>
    %112 = math.exp %111 : vector<16x16xf32>
    %cst_37 = arith.constant dense<0.000000e+00> : vector<16xf32>
    %113 = vector.multi_reduction <add>, %112, %cst_37 [1] : vector<16x16xf32> to vector<16xf32>
    %114 = vector.shape_cast %113 : vector<16xf32> to vector<16x1xf32>
    %115 = vector.broadcast %114 : vector<16x1xf32> to vector<16x16xf32>
    %116 = arith.divf %112, %115 : vector<16x16xf32>
    %117 = arith.truncf %116 : vector<16x16xf32> to vector<16x16xbf16>
    %118 = vector.extract_strided_slice %38 {offsets = [0, 16], sizes = [16, 8], strides = [1, 1]} : vector<16x32xbf16> to vector<16x8xbf16>
    %cst_38 = arith.constant dense<0.000000e+00> : vector<16x8xf32>
    %119 = tpu.matmul %117, %118, %cst_38 {dimension_numbers = #tpu.dot_dimension_numbers<[1], [0], [0], [1], [0, 0, 1, 1], [], []>} : vector<16x16xbf16>, vector<16x8xbf16>, vector<16x8xf32> -> vector<16x8xf32>
    %120 = arith.truncf %119 : vector<16x8xf32> to vector<16x8xbf16>
    %121 = vector.extract_strided_slice %13 {offsets = [16, 0], sizes = [8, 32], strides = [1, 1]} : vector<32x32xbf16> to vector<8x32xbf16>
    %cst_39 = arith.constant dense<0.000000e+00> : vector<16x32xf32>
    %122 = tpu.matmul %120, %121, %cst_39 {dimension_numbers = #tpu.dot_dimension_numbers<[1], [0], [0], [1], [0, 0, 1, 1], [], []>} : vector<16x8xbf16>, vector<8x32xbf16>, vector<16x32xf32> -> vector<16x32xf32>
    %123 = arith.addf %103, %122 : vector<16x32xf32>
    %124 = vector.extract_strided_slice %50 {offsets = [0, 24], sizes = [16, 8], strides = [1, 1]} : vector<16x32xbf16> to vector<16x8xbf16>
    %125 = vector.extract_strided_slice %62 {offsets = [0, 24], sizes = [16, 8], strides = [1, 1]} : vector<16x32xbf16> to vector<16x8xbf16>
    %cst_40 = arith.constant dense<0.000000e+00> : vector<16x16xf32>
    %126 = tpu.matmul %124, %125, %cst_40 {dimension_numbers = #tpu.dot_dimension_numbers<[1], [1], [0], [0], [0, 0, 1, 0], [], []>} : vector<16x8xbf16>, vector<16x8xbf16>, vector<16x16xf32> -> vector<16x16xf32>
    %127 = arith.addf %126, %10 : vector<16x16xf32>
    %cst_41 = arith.constant dense<0xFF800000> : vector<16xf32>
    %128 = vector.multi_reduction <maximumf>, %127, %cst_41 [1] : vector<16x16xf32> to vector<16xf32>
    %129 = vector.shape_cast %128 : vector<16xf32> to vector<16x1xf32>
    %130 = vector.broadcast %129 : vector<16x1xf32> to vector<16x16xf32>
    %131 = arith.subf %127, %130 : vector<16x16xf32>
    %132 = math.exp %131 : vector<16x16xf32>
    %cst_42 = arith.constant dense<0.000000e+00> : vector<16xf32>
    %133 = vector.multi_reduction <add>, %132, %cst_42 [1] : vector<16x16xf32> to vector<16xf32>
    %134 = vector.shape_cast %133 : vector<16xf32> to vector<16x1xf32>
    %135 = vector.broadcast %134 : vector<16x1xf32> to vector<16x16xf32>
    %136 = arith.divf %132, %135 : vector<16x16xf32>
    %137 = arith.truncf %136 : vector<16x16xf32> to vector<16x16xbf16>
    %138 = vector.extract_strided_slice %38 {offsets = [0, 24], sizes = [16, 8], strides = [1, 1]} : vector<16x32xbf16> to vector<16x8xbf16>
    %cst_43 = arith.constant dense<0.000000e+00> : vector<16x8xf32>
    %139 = tpu.matmul %137, %138, %cst_43 {dimension_numbers = #tpu.dot_dimension_numbers<[1], [0], [0], [1], [0, 0, 1, 1], [], []>} : vector<16x16xbf16>, vector<16x8xbf16>, vector<16x8xf32> -> vector<16x8xf32>
    %140 = arith.truncf %139 : vector<16x8xf32> to vector<16x8xbf16>
    %141 = vector.extract_strided_slice %13 {offsets = [24, 0], sizes = [8, 32], strides = [1, 1]} : vector<32x32xbf16> to vector<8x32xbf16>
    %cst_44 = arith.constant dense<0.000000e+00> : vector<16x32xf32>
    %142 = tpu.matmul %140, %141, %cst_44 {dimension_numbers = #tpu.dot_dimension_numbers<[1], [0], [0], [1], [0, 0, 1, 1], [], []>} : vector<16x8xbf16>, vector<8x32xbf16>, vector<16x32xf32> -> vector<16x32xf32>
    %143 = arith.addf %123, %142 : vector<16x32xf32>
    %144 = arith.addf %3, %143 : vector<16x32xf32>
    %145 = vector.extract_strided_slice %11 {offsets = [0, 1, 0], sizes = [1, 1, 32], strides = [1, 1, 1]} : vector<1x2x32xf32> to vector<1x1x32xf32>
    %146 = vector.shape_cast %145 : vector<1x1x32xf32> to vector<32xf32>
    %147 = arith.mulf %144, %144 : vector<16x32xf32>
    %cst_45 = arith.constant dense<0.000000e+00> : vector<16xf32>
    %148 = vector.multi_reduction <add>, %147, %cst_45 [1] : vector<16x32xf32> to vector<16xf32>
    %149 = vector.shape_cast %148 : vector<16xf32> to vector<16x1xf32>
    %cst_46 = arith.constant 3.200000e+01 : f32
    %150 = vector.broadcast %cst_46 : f32 to vector<16x1xf32>
    %151 = arith.divf %149, %150 : vector<16x1xf32>
    %cst_47 = arith.constant 9.99999997E-7 : f32
    %152 = vector.broadcast %cst_47 : f32 to vector<16x1xf32>
    %153 = arith.addf %151, %152 : vector<16x1xf32>
    %154 = math.rsqrt %153 : vector<16x1xf32>
    %155 = vector.broadcast %154 : vector<16x1xf32> to vector<16x32xf32>
    %156 = arith.mulf %144, %155 : vector<16x32xf32>
    %157 = vector.shape_cast %146 : vector<32xf32> to vector<1x32xf32>
    %158 = vector.broadcast %157 : vector<1x32xf32> to vector<16x32xf32>
    %159 = arith.mulf %156, %158 : vector<16x32xf32>
    %160 = arith.truncf %159 : vector<16x32xf32> to vector<16x32xbf16>
    %c0_48 = arith.constant 0 : index
    %c0_49 = arith.constant 0 : index
    %c0_50 = arith.constant 0 : index
    %161 = vector.load %arg6[%c0_48, %c0_49, %c0_50] : memref<1x32x128xbf16, #tpu.memory_space<vmem>>, vector<1x32x128xbf16>
    %162 = vector.shape_cast %161 : vector<1x32x128xbf16> to vector<32x128xbf16>
    %cst_51 = arith.constant dense<0.000000e+00> : vector<16x128xf32>
    %163 = tpu.matmul %160, %162, %cst_51 {dimension_numbers = #tpu.dot_dimension_numbers<[1], [0], [0], [1], [0, 0, 1, 1], [], []>} : vector<16x32xbf16>, vector<32x128xbf16>, vector<16x128xf32> -> vector<16x128xf32>
    %164 = vector.extract_strided_slice %163 {offsets = [0, 0], sizes = [16, 64], strides = [1, 1]} : vector<16x128xf32> to vector<16x64xf32>
    %165 = vector.extract_strided_slice %163 {offsets = [0, 64], sizes = [16, 64], strides = [1, 1]} : vector<16x128xf32> to vector<16x64xf32>
    %cst_52 = arith.constant 0.000000e+00 : f32
    %166 = vector.broadcast %cst_52 : f32 to vector<16x64xf32>
    %167 = arith.subf %166, %164 : vector<16x64xf32>
    %168 = math.exp %167 : vector<16x64xf32>
    %cst_53 = arith.constant 1.000000e+00 : f32
    %169 = vector.broadcast %cst_53 : f32 to vector<16x64xf32>
    %170 = arith.addf %169, %168 : vector<16x64xf32>
    %cst_54 = arith.constant 1.000000e+00 : f32
    %171 = vector.broadcast %cst_54 : f32 to vector<16x64xf32>
    %172 = arith.divf %171, %170 : vector<16x64xf32>
    %173 = arith.mulf %164, %172 : vector<16x64xf32>
    %174 = arith.mulf %173, %165 : vector<16x64xf32>
    %175 = arith.truncf %174 : vector<16x64xf32> to vector<16x64xbf16>
    %c0_55 = arith.constant 0 : index
    %c0_56 = arith.constant 0 : index
    %c0_57 = arith.constant 0 : index
    %176 = vector.load %arg7[%c0_55, %c0_56, %c0_57] : memref<1x64x32xbf16, #tpu.memory_space<vmem>>, vector<1x64x32xbf16>
    %177 = vector.shape_cast %176 : vector<1x64x32xbf16> to vector<64x32xbf16>
    %cst_58 = arith.constant dense<0.000000e+00> : vector<16x32xf32>
    %178 = tpu.matmul %175, %177, %cst_58 {dimension_numbers = #tpu.dot_dimension_numbers<[1], [0], [0], [1], [0, 0, 1, 1], [], []>} : vector<16x64xbf16>, vector<64x32xbf16>, vector<16x32xf32> -> vector<16x32xf32>
    %179 = arith.addf %144, %178 : vector<16x32xf32>
    %c0_59 = arith.constant 0 : index
    %c0_60 = arith.constant 0 : index
    %180 = vector.load %arg12[%c0_59, %c0_60] : memref<16x32xf32, #tpu.memory_space<vmem>>, vector<16x32xf32>
    tpu.vector_store %arg12[%c0_59, %c0_60], %179 {strides = array<i32>} : memref<16x32xf32, #tpu.memory_space<vmem>>, vector<16x32xf32>,
    %c1_i32 = arith.constant 1 : i32
    %181 = arith.cmpi eq, %arg0, %c1_i32 : i32
    %182 = arith.extui %181 : i1 to i32
    %c0_i32_61 = arith.constant 0 : i32
    %183 = arith.cmpi ne, %182, %c0_i32_61 : i32
    scf.if %183 {
      %c0_62 = arith.constant 0 : index
      %c0_63 = arith.constant 0 : index
      %184 = vector.load %arg9[%c0_62, %c0_63] : memref<1x32xf32, #tpu.memory_space<vmem>>, vector<1x32xf32>
      %185 = arith.mulf %179, %179 : vector<16x32xf32>
      %cst_64 = arith.constant dense<0.000000e+00> : vector<16xf32>
      %186 = vector.multi_reduction <add>, %185, %cst_64 [1] : vector<16x32xf32> to vector<16xf32>
      %187 = vector.shape_cast %186 : vector<16xf32> to vector<16x1xf32>
      %cst_65 = arith.constant 3.200000e+01 : f32
      %188 = vector.broadcast %cst_65 : f32 to vector<16x1xf32>
      %189 = arith.divf %187, %188 : vector<16x1xf32>
      %cst_66 = arith.constant 9.99999997E-7 : f32
      %190 = vector.broadcast %cst_66 : f32 to vector<16x1xf32>
      %191 = arith.addf %189, %190 : vector<16x1xf32>
      %192 = math.rsqrt %191 : vector<16x1xf32>
      %193 = vector.broadcast %192 : vector<16x1xf32> to vector<16x32xf32>
      %194 = arith.mulf %179, %193 : vector<16x32xf32>
      %195 = vector.broadcast %184 : vector<1x32xf32> to vector<16x32xf32>
      %196 = arith.mulf %194, %195 : vector<16x32xf32>
      %197 = arith.truncf %196 : vector<16x32xf32> to vector<16x32xbf16>
      %c0_67 = arith.constant 0 : index
      %c0_68 = arith.constant 0 : index
      %198 = vector.load %arg10[%c0_67, %c0_68] : memref<32x64xbf16, #tpu.memory_space<vmem>>, vector<32x64xbf16>
      %cst_69 = arith.constant dense<0.000000e+00> : vector<16x64xf32>
      %199 = tpu.matmul %197, %198, %cst_69 {dimension_numbers = #tpu.dot_dimension_numbers<[1], [0], [0], [1], [0, 0, 1, 1], [], []>} : vector<16x32xbf16>, vector<32x64xbf16>, vector<16x64xf32> -> vector<16x64xf32>
      %c0_70 = arith.constant 0 : index
      %c0_71 = arith.constant 0 : index
      %200 = vector.load %arg11[%c0_70, %c0_71] : memref<16x64xf32, #tpu.memory_space<vmem>>, vector<16x64xf32>
      tpu.vector_store %arg11[%c0_70, %c0_71], %199 {strides = array<i32>} : memref<16x64xf32, #tpu.memory_space<vmem>>, vector<16x64xf32>,
    } else {
    }
    return
  }
  func.func @transform_0(%arg0: i32) -> (i32, i32) {
    %c0_i32 = arith.constant 0 : i32
    %c0_i32_0 = arith.constant 0 : i32
    %c0_i32_1 = arith.constant 0 : i32
    return %c0_i32, %c0_i32_0 : i32, i32
  }
  func.func @transform_1(%arg0: i32) -> (i32, i32, i32) {
    %c0_i32 = arith.constant 0 : i32
    %c0_i32_0 = arith.constant 0 : i32
    %c0_i32_1 = arith.constant 0 : i32
    %c0_i32_2 = arith.constant 0 : i32
    return %c0_i32, %c0_i32_0, %c0_i32_1 : i32, i32, i32
  }
  func.func @transform_2(%arg0: i32) -> (i32, i32) {
    %c0_i32 = arith.constant 0 : i32
    %c0_i32_0 = arith.constant 0 : i32
    %c0_i32_1 = arith.constant 0 : i32
    return %c0_i32, %c0_i32_0 : i32, i32
  }
  func.func @transform_3(%arg0: i32) -> (i32, i32, i32) {
    %c0_i32 = arith.constant 0 : i32
    %c0_i32_0 = arith.constant 0 : i32
    %c0_i32_1 = arith.constant 0 : i32
    return %arg0, %c0_i32, %c0_i32_0 : i32, i32, i32
  }
  func.func @transform_4(%arg0: i32) -> (i32, i32, i32) {
    %c0_i32 = arith.constant 0 : i32
    %c0_i32_0 = arith.constant 0 : i32
    %c0_i32_1 = arith.constant 0 : i32
    return %arg0, %c0_i32, %c0_i32_0 : i32, i32, i32
  }
  func.func @transform_5(%arg0: i32) -> (i32, i32, i32) {
    %c0_i32 = arith.constant 0 : i32
    %c0_i32_0 = arith.constant 0 : i32
    %c0_i32_1 = arith.constant 0 : i32
    return %arg0, %c0_i32, %c0_i32_0 : i32, i32, i32
  }
  func.func @transform_6(%arg0: i32) -> (i32, i32, i32) {
    %c0_i32 = arith.constant 0 : i32
    %c0_i32_0 = arith.constant 0 : i32
    %c0_i32_1 = arith.constant 0 : i32
    return %arg0, %c0_i32, %c0_i32_0 : i32, i32, i32
  }
  func.func @transform_7(%arg0: i32) -> (i32, i32, i32) {
    %c0_i32 = arith.constant 0 : i32
    %c0_i32_0 = arith.constant 0 : i32
    %c0_i32_1 = arith.constant 0 : i32
    return %arg0, %c0_i32, %c0_i32_0 : i32, i32, i32
  }
  func.func @transform_8(%arg0: i32) -> (i32, i32) {
    %c0_i32 = arith.constant 0 : i32
    %c0_i32_0 = arith.constant 0 : i32
    %c0_i32_1 = arith.constant 0 : i32
    return %c0_i32, %c0_i32_0 : i32, i32
  }
  func.func @transform_9(%arg0: i32) -> (i32, i32) {
    %c0_i32 = arith.constant 0 : i32
    %c0_i32_0 = arith.constant 0 : i32
    %c0_i32_1 = arith.constant 0 : i32
    return %c0_i32, %c0_i32_0 : i32, i32
  }
  func.func @transform_10(%arg0: i32) -> (i32, i32) {
    %c0_i32 = arith.constant 0 : i32
    %c0_i32_0 = arith.constant 0 : i32
    %c0_i32_1 = arith.constant 0 : i32
    return %c0_i32, %c0_i32_0 : i32, i32
  }
}

</mosaic_0001>

<llo_original>
// kernel: tpu_custom_call.1
$region0: #{tpu_custom_call.1}
  #allocation0 [shape = 'u32[]', space=smem, size = 0x4, offset = 0x4, fixed_abs, tag = 'smem constant byte address 0x4 - core index']
  #allocation1 [shape = 'u32[144,128]{1,0:T(1,128)}', space=vmem, size = 0x12000, scoped, tag = 'internal scratch']
  #allocation2 [shape = 'f32[16,32]{1,0:T(8,128)}', space=vmem, size = 0x2000, scoped, tag = 'scratch operand']
  %s0 = inlined_call_operand.hbm [shape: f32[16,32], index: 0, kind: input, shape index: {}]
  %s1 = inlined_call_operand.vmem [shape: f32[3,16,32], index: 1, kind: input, shape index: {}]
  %s2 = inlined_call_operand.hbm [shape: f32[16,16], index: 2, kind: input, shape index: {}]
  %s3 = inlined_call_operand.vmem [shape: bf16[2,32,96], index: 3, kind: input, shape index: {}]
  %s4 = inlined_call_operand.hbm [shape: bf16[2,32,32], index: 4, kind: input, shape index: {}]
  %s5 = inlined_call_operand.vmem [shape: bf16[2,32,128], index: 5, kind: input, shape index: {}]
  %s6 = inlined_call_operand.vmem [shape: bf16[2,64,32], index: 6, kind: input, shape index: {}]
  %s7 = inlined_call_operand.hbm [shape: f32[2,2,32], index: 7, kind: input, shape index: {}]
  %s8 = inlined_call_operand.vmem [shape: f32[1,32], index: 8, kind: input, shape index: {}]
  %s9 = inlined_call_operand.vmem [shape: bf16[32,64], index: 9, kind: input, shape index: {}]
  %s10 = inlined_call_operand.hbm [shape: f32[16,64], index: 10, kind: output, shape index: {}]
  %s11 = sld [smem:[#allocation0]]
  $region97: #{tpu_custom_call.1} parent=0
    _
  %s13 = ssub.s32 1, %s11
  %s14 = scalar_select 0, %s13, %s11
  $region1: #{tpu_custom_call.1} parent=0
    #allocation3 [shape = 'u8[8192]{0}', space=vmem, size = 0x2000, scoped, tag = 'input window, operand 0, single buffered']
    #allocation4 [shape = 's32[2]{0}', space=sflag, size = 0x8, scoped, tag = 'scoped memory for tpu_custom_call.1']
    #allocation5 [shape = 's32[2]{0}', space=sflag, size = 0x8, scoped, tag = 'scoped memory for tpu_custom_call.1']
    #allocation6 [shape = 'u8[8192]{0}', space=vmem, size = 0x2000, scoped, tag = 'input window, operand 2, single buffered']
    #allocation7 [shape = 's32[1]{0}', space=sflag, size = 0x4, scoped, tag = 'scoped memory for tpu_custom_call.1']
    #allocation8 [shape = 'u8[16384]{0}', space=vmem, size = 0x4000, scoped, tag = 'input window, operand 4']
    #allocation9 [shape = 'u8[2048]{0}', space=vmem, size = 0x800, scoped, tag = 'input window, operand 7']
    #allocation10 [shape = 'u8[8192]{0}', space=vmem, size = 0x2000, scoped, tag = 'output window, operand 0, single buffered']
    %15 = vsyncpa [#allocation4], 0
    %16 = vsyncpa [#allocation7], 0
    %17 = vsyncpa [#allocation5], 0
    loop: start=0, step=1, limit=4
    $region2: #{tpu_custom_call.1} parent=1 // loop_pre_header
      _
    $region3: #{tpu_custom_call.1} parent=1 // loop_header
      %s19 = sphi 0, %s23
      %p20 = scmp.ge.s32.totalorder %s19, 4
      %s27 = sphi 0, %s27
      %s29 = sphi 0, %s27
      %s30 = sphi 0, %s29
      %s44 = sphi 0, %s30
      %s48 = sphi 0, %s48
      %s50 = sphi 0, %s48
      %s51 = sphi 0, %s50
      %s65 = sphi 0, %s51
      %s69 = sphi 0, %s69
      %s71 = sphi 0, %s69
      %s72 = sphi 0, %s71
      %s86 = sphi 0, %s72
      %s92 = sphi 0, %s94
      %s95 = sphi 0, %s92
      %s96 = sphi 0, %s95
      %s112 = sphi 0, %s96
      %s118 = sphi 0, %s120
      %s121 = sphi 0, %s118
      %s122 = sphi 0, %s121
      %s138 = sphi 0, %s122
      %s144 = sphi 0, %s146
      %s147 = sphi 0, %s144
      %s148 = sphi 0, %s147
      %s164 = sphi 0, %s148
      %s170 = sphi 0, %s172
      %s173 = sphi 0, %s170
      %s174 = sphi 0, %s173
      %s190 = sphi 0, %s174
      %s196 = sphi 0, %s198
      %s199 = sphi 0, %s196
      %s200 = sphi 0, %s199
      %s216 = sphi 0, %s200
      %s220 = sphi 0, %s220
      %s222 = sphi 0, %s220
      %s223 = sphi 0, %s222
      %s237 = sphi 0, %s223
      %s241 = sphi 0, %s241
      %s243 = sphi 0, %s241
      %s244 = sphi 0, %s243
      %s258 = sphi 0, %s244
      %s262 = sphi 0, %s262
      %s264 = sphi 0, %s262
      %s265 = sphi 0, %s264
      %s279 = sphi 0, %s265
    $region4: #{tpu_custom_call.1} parent=1 // loop_header_branch
      %22 = sbr.rel (%p20) target = $region8
    $region5: #{tpu_custom_call.1} parent=1 // loop_body
      %s24 = ssub.s32 %s19, 1
      %s25 = ssub.s32 %s19, 2
      %s26 = sadd.s32 %s19, 1
      %s28 = sadd.s32 %s27, 1
      %p31 = scmp.eq.s32.totalorder %s19, 1
      %p32 = scmp.ne.s32.totalorder %s27, %s29
      %p33 = scmp.eq.s32.totalorder %s19, 0
      %p34 = por %p32, %p33
      %p35 = scmp.ne.s32.totalorder %s27, %s29
      %p36 = scmp.eq.s32.totalorder %s24, 1
      %p37 = por %p35, %p36
      %p38 = scmp.ne.s32.totalorder %s29, %s30
      %p39 = scmp.eq.s32.totalorder %s24, 0
      %p40 = por %p38, %p39
      %p41 = scmp.ne.s32.totalorder %s29, %s30
      %p42 = scmp.eq.s32.totalorder %s25, 1
      %p43 = por %p41, %p42
      %p45 = scmp.ne.s32.totalorder %s30, %s44
      %p46 = scmp.eq.s32.totalorder %s25, 0
      %p47 = por %p45, %p46
      %s49 = sadd.s32 %s48, 1
      %p52 = scmp.eq.s32.totalorder %s19, 1
      %p53 = scmp.ne.s32.totalorder %s48, %s50
      %p54 = scmp.eq.s32.totalorder %s19, 0
      %p55 = por %p53, %p54
      %p56 = scmp.ne.s32.totalorder %s48, %s50
      %p57 = scmp.eq.s32.totalorder %s24, 1
      %p58 = por %p56, %p57
      %p59 = scmp.ne.s32.totalorder %s50, %s51
      %p60 = scmp.eq.s32.totalorder %s24, 0
      %p61 = por %p59, %p60
      %p62 = scmp.ne.s32.totalorder %s50, %s51
      %p63 = scmp.eq.s32.totalorder %s25, 1
      %p64 = por %p62, %p63
      %p66 = scmp.ne.s32.totalorder %s51, %s65
      %p67 = scmp.eq.s32.totalorder %s25, 0
      %p68 = por %p66, %p67
      %s70 = sadd.s32 %s69, 1
      %p73 = scmp.eq.s32.totalorder %s19, 1
      %p74 = scmp.ne.s32.totalorder %s69, %s71
      %p75 = scmp.eq.s32.totalorder %s19, 0
      %p76 = por %p74, %p75
      %p77 = scmp.ne.s32.totalorder %s69, %s71
      %p78 = scmp.eq.s32.totalorder %s24, 1
      %p79 = por %p77, %p78
      %p80 = scmp.ne.s32.totalorder %s71, %s72
      %p81 = scmp.eq.s32.totalorder %s24, 0
      %p82 = por %p80, %p81
      %p83 = scmp.ne.s32.totalorder %s71, %s72
      %p84 = scmp.eq.s32.totalorder %s25, 1
      %p85 = por %p83, %p84
      %p87 = scmp.ne.s32.totalorder %s72, %s86
      %p88 = scmp.eq.s32.totalorder %s25, 0
      %p89 = por %p87, %p88
      %s90 = ssub.s32 %s19, %s26
      %p91 = scmp.eq.s32.totalorder %s90, 0
      %s93 = sadd.s32 %s92, 1
      %s94 = scalar_select %p91, %s92, %s93
      %p97 = pneg %p91
      %p98 = scmp.eq.s32.totalorder %s19, 1
      %p99 = por %p97, %p98
      %p100 = scmp.ne.s32.totalorder %s92, %s95
      %p101 = scmp.eq.s32.totalorder %s19, 0
      %p102 = por %p100, %p101
      %p103 = scmp.ne.s32.totalorder %s92, %s95
      %p104 = scmp.eq.s32.totalorder %s24, 1
      %p105 = por %p103, %p104
      %p106 = scmp.ne.s32.totalorder %s95, %s96
      %p107 = scmp.eq.s32.totalorder %s24, 0
      %p108 = por %p106, %p107
      %p109 = scmp.ne.s32.totalorder %s95, %s96
      %p110 = scmp.eq.s32.totalorder %s25, 1
      %p111 = por %p109, %p110
      %p113 = scmp.ne.s32.totalorder %s96, %s112
      %p114 = scmp.eq.s32.totalorder %s25, 0
      %p115 = por %p113, %p114
      %s116 = ssub.s32 %s19, %s26
      %p117 = scmp.eq.s32.totalorder %s116, 0
      %s119 = sadd.s32 %s118, 1
      %s120 = scalar_select %p117, %s118, %s119
      %p123 = pneg %p117
      %p124 = scmp.eq.s32.totalorder %s19, 1
      %p125 = por %p123, %p124
      %p126 = scmp.ne.s32.totalorder %s118, %s121
      %p127 = scmp.eq.s32.totalorder %s19, 0
      %p128 = por %p126, %p127
      %p129 = scmp.ne.s32.totalorder %s118, %s121
      %p130 = scmp.eq.s32.totalorder %s24, 1
      %p131 = por %p129, %p130
      %p132 = scmp.ne.s32.totalorder %s121, %s122
      %p133 = scmp.eq.s32.totalorder %s24, 0
      %p134 = por %p132, %p133
      %p135 = scmp.ne.s32.totalorder %s121, %s122
      %p136 = scmp.eq.s32.totalorder %s25, 1
      %p137 = por %p135, %p136
      %p139 = scmp.ne.s32.totalorder %s122, %s138
      %p140 = scmp.eq.s32.totalorder %s25, 0
      %p141 = por %p139, %p140
      %s142 = ssub.s32 %s19, %s26
      %p143 = scmp.eq.s32.totalorder %s142, 0
      %s145 = sadd.s32 %s144, 1
      %s146 = scalar_select %p143, %s144, %s145
      %p149 = pneg %p143
      %p150 = scmp.eq.s32.totalorder %s19, 1
      %p151 = por %p149, %p150
      %p152 = scmp.ne.s32.totalorder %s144, %s147
      %p153 = scmp.eq.s32.totalorder %s19, 0
      %p154 = por %p152, %p153
      %p155 = scmp.ne.s32.totalorder %s144, %s147
      %p156 = scmp.eq.s32.totalorder %s24, 1
      %p157 = por %p155, %p156
      %p158 = scmp.ne.s32.totalorder %s147, %s148
      %p159 = scmp.eq.s32.totalorder %s24, 0
      %p160 = por %p158, %p159
      %p161 = scmp.ne.s32.totalorder %s147, %s148
      %p162 = scmp.eq.s32.totalorder %s25, 1
      %p163 = por %p161, %p162
      %p165 = scmp.ne.s32.totalorder %s148, %s164
      %p166 = scmp.eq.s32.totalorder %s25, 0
      %p167 = por %p165, %p166
      %s168 = ssub.s32 %s19, %s26
      %p169 = scmp.eq.s32.totalorder %s168, 0
      %s171 = sadd.s32 %s170, 1
      %s172 = scalar_select %p169, %s170, %s171
      %p175 = pneg %p169
      %p176 = scmp.eq.s32.totalorder %s19, 1
      %p177 = por %p175, %p176
      %p178 = scmp.ne.s32.totalorder %s170, %s173
      %p179 = scmp.eq.s32.totalorder %s19, 0
      %p180 = por %p178, %p179
      %p181 = scmp.ne.s32.totalorder %s170, %s173
      %p182 = scmp.eq.s32.totalorder %s24, 1
      %p183 = por %p181, %p182
      %p184 = scmp.ne.s32.totalorder %s173, %s174
      %p185 = scmp.eq.s32.totalorder %s24, 0
      %p186 = por %p184, %p185
      %p187 = scmp.ne.s32.totalorder %s173, %s174
      %p188 = scmp.eq.s32.totalorder %s25, 1
      %p189 = por %p187, %p188
      %p191 = scmp.ne.s32.totalorder %s174, %s190
      %p192 = scmp.eq.s32.totalorder %s25, 0
      %p193 = por %p191, %p192
      %s194 = ssub.s32 %s19, %s26
      %p195 = scmp.eq.s32.totalorder %s194, 0
      %s197 = sadd.s32 %s196, 1
      %s198 = scalar_select %p195, %s196, %s197
      %p201 = pneg %p195
      %p202 = scmp.eq.s32.totalorder %s19, 1
      %p203 = por %p201, %p202
      %p204 = scmp.ne.s32.totalorder %s196, %s199
      %p205 = scmp.eq.s32.totalorder %s19, 0
      %p206 = por %p204, %p205
      %p207 = scmp.ne.s32.totalorder %s196, %s199
      %p208 = scmp.eq.s32.totalorder %s24, 1
      %p209 = por %p207, %p208
      %p210 = scmp.ne.s32.totalorder %s199, %s200
      %p211 = scmp.eq.s32.totalorder %s24, 0
      %p212 = por %p210, %p211
      %p213 = scmp.ne.s32.totalorder %s199, %s200
      %p214 = scmp.eq.s32.totalorder %s25, 1
      %p215 = por %p213, %p214
      %p217 = scmp.ne.s32.totalorder %s200, %s216
      %p218 = scmp.eq.s32.totalorder %s25, 0
      %p219 = por %p217, %p218
      %s221 = sadd.s32 %s220, 1
      %p224 = scmp.eq.s32.totalorder %s19, 1
      %p225 = scmp.ne.s32.totalorder %s220, %s222
      %p226 = scmp.eq.s32.totalorder %s19, 0
      %p227 = por %p225, %p226
      %p228 = scmp.ne.s32.totalorder %s220, %s222
      %p229 = scmp.eq.s32.totalorder %s24, 1
      %p230 = por %p228, %p229
      %p231 = scmp.ne.s32.totalorder %s222, %s223
      %p232 = scmp.eq.s32.totalorder %s24, 0
      %p233 = por %p231, %p232
      %p234 = scmp.ne.s32.totalorder %s222, %s223
      %p235 = scmp.eq.s32.totalorder %s25, 1
      %p236 = por %p234, %p235
      %p238 = scmp.ne.s32.totalorder %s223, %s237
      %p239 = scmp.eq.s32.totalorder %s25, 0
      %p240 = por %p238, %p239
      %s242 = sadd.s32 %s241, 1
      %p245 = scmp.eq.s32.totalorder %s19, 1
      %p246 = scmp.ne.s32.totalorder %s241, %s243
      %p247 = scmp.eq.s32.totalorder %s19, 0
      %p248 = por %p246, %p247
      %p249 = scmp.ne.s32.totalorder %s241, %s243
      %p250 = scmp.eq.s32.totalorder %s24, 1
      %p251 = por %p249, %p250
      %p252 = scmp.ne.s32.totalorder %s243, %s244
      %p253 = scmp.eq.s32.totalorder %s24, 0
      %p254 = por %p252, %p253
      %p255 = scmp.ne.s32.totalorder %s243, %s244
      %p256 = scmp.eq.s32.totalorder %s25, 1
      %p257 = por %p255, %p256
      %p259 = scmp.ne.s32.totalorder %s244, %s258
      %p260 = scmp.eq.s32.totalorder %s25, 0
      %p261 = por %p259, %p260
      %s263 = sadd.s32 %s262, 1
      %p266 = scmp.eq.s32.totalorder %s19, 1
      %p267 = scmp.ne.s32.totalorder %s262, %s264
      %p268 = scmp.eq.s32.totalorder %s19, 0
      %p269 = por %p267, %p268
      %p270 = scmp.ne.s32.totalorder %s262, %s264
      %p271 = scmp.eq.s32.totalorder %s24, 1
      %p272 = por %p270, %p271
      %p273 = scmp.ne.s32.totalorder %s264, %s265
      %p274 = scmp.eq.s32.totalorder %s24, 0
      %p275 = por %p273, %p274
      %p276 = scmp.ne.s32.totalorder %s264, %s265
      %p277 = scmp.eq.s32.totalorder %s25, 1
      %p278 = por %p276, %p277
      %p280 = scmp.ne.s32.totalorder %s265, %s279
      %p281 = scmp.eq.s32.totalorder %s25, 0
      %p282 = por %p280, %p281
      %p283 = scmp.le.s32.totalorder 1, %s19
      %p284 = scmp.lt.s32.totalorder %s19, 3
      %p285 = pnand %p283, %p284
      %p286 = pneg %p285
      // Predicated region
      $region9: #{tpu_custom_call.1} parent=5 // pred_check
        _
      $region10: #{tpu_custom_call.1} parent=5 // pred_check_branch
        %288 = sbr.rel (%p285) target = $region12
      $region11: #{tpu_custom_call.1} parent=5 // pred_region
        %s289 = ssub.s32 %s19, 1
        // Predicated region
        $region13: #{tpu_custom_call.1} parent=11 // pred_check
          %p290 = pneg %p40
        $region14: #{tpu_custom_call.1} parent=11 // pred_check_branch
          %292 = sbr.rel (%p290) target = $region16
        $region15: #{tpu_custom_call.1} parent=11 // pred_region
          %s294 = ssub.s32 256, 256
          %295 = vsyncadd [#allocation4], %s294
          %s296 = sshll.u32 [#allocation3], 4
          %s297 = int_to_ptr.vmem [resolvable:$true] %s296
          %302 = dma.hbm_to_vmem [thread:$0]  %s0, 256, %s297, [#allocation4], 128, 128, 8
        $region16: #{tpu_custom_call.1} parent=11 // pred_fallthru
          _
        // Predicated region
        $region17: #{tpu_custom_call.1} parent=11 // pred_check
          %p303 = pneg %p61
        $region18: #{tpu_custom_call.1} parent=11 // pred_check_branch
          %305 = sbr.rel (%p303) target = $region20
        $region19: #{tpu_custom_call.1} parent=11 // pred_region
          _
        $region20: #{tpu_custom_call.1} parent=11 // pred_fallthru
          _
        // Predicated region
        $region21: #{tpu_custom_call.1} parent=11 // pred_check
          %p306 = pneg %p82
        $region22: #{tpu_custom_call.1} parent=11 // pred_check_branch
          %308 = sbr.rel (%p306) target = $region24
        $region23: #{tpu_custom_call.1} parent=11 // pred_region
          %s310 = ssub.s32 256, 256
          %311 = vsyncadd [#allocation7], %s310
          %s312 = sshll.u32 [#allocation6], 4
          %s313 = int_to_ptr.vmem [resolvable:$true] %s312
          %318 = dma.hbm_to_vmem [thread:$0]  %s2, 256, %s313, [#allocation7], 128, 128, 8
        $region24: #{tpu_custom_call.1} parent=11 // pred_fallthru
          _
        // Predicated region
        $region25: #{tpu_custom_call.1} parent=11 // pred_check
          %p319 = pneg %p233
        $region26: #{tpu_custom_call.1} parent=11 // pred_check_branch
          %321 = sbr.rel (%p319) target = $region28
        $region27: #{tpu_custom_call.1} parent=11 // pred_region
          _
        $region28: #{tpu_custom_call.1} parent=11 // pred_fallthru
          _
        // Predicated region
        $region29: #{tpu_custom_call.1} parent=11 // pred_check
          %p322 = pneg %p254
        $region30: #{tpu_custom_call.1} parent=11 // pred_check_branch
          %324 = sbr.rel (%p322) target = $region32
        $region31: #{tpu_custom_call.1} parent=11 // pred_region
          _
        $region32: #{tpu_custom_call.1} parent=11 // pred_fallthru
          _
      $region12: #{tpu_custom_call.1} parent=5 // pred_fallthru
        _
      %p325 = scmp.lt.s32.totalorder %s19, 2
      // Predicated region
      $region33: #{tpu_custom_call.1} parent=5 // pred_check
        %p326 = pneg %p325
      $region34: #{tpu_custom_call.1} parent=5 // pred_check_branch
        %328 = sbr.rel (%p326) target = $region36
      $region35: #{tpu_custom_call.1} parent=5 // pred_region
        // Predicated region
        $region37: #{tpu_custom_call.1} parent=35 // pred_check
          %p329 = pneg %p102
        $region38: #{tpu_custom_call.1} parent=35 // pred_check_branch
          %331 = sbr.rel (%p329) target = $region40
        $region39: #{tpu_custom_call.1} parent=35 // pred_region
          %p332 = scmp.lt.s32.totalorder %s19, 1
          %s333 = scalar_select %p332, %s19, 1
          %s334 = smul.addr %s333, 4
          %s335 = smul.addr %s334, 4
          %s336 = scalar_lea.vmem %s3, %s335
        $region40: #{tpu_custom_call.1} parent=35 // pred_fallthru
          _
        // Predicated region
        $region41: #{tpu_custom_call.1} parent=35 // pred_check
          %p337 = pneg %p128
        $region42: #{tpu_custom_call.1} parent=35 // pred_check_branch
          %339 = sbr.rel (%p337) target = $region44
        $region43: #{tpu_custom_call.1} parent=35 // pred_region
          %s340 = sand.u32 %s19, 1
          %s341 = scalar_lea.sflag [#allocation4], %s340
          %s342 = sand.u32 %s118, 1
          %s343 = smul.addr %s342, 16
          %s344 = scalar_lea.vmem [#allocation8], %s343
          %s346 = ssub.s32 256, 256
          %347 = vsyncadd %s341, %s346
          %s348 = smul.addr %s19, 4
          %s349 = smul.addr %s348, 64
          %s350 = scalar_lea.hbm %s4, %s349
          %s351 = sshll.u32 %s344, 4
          %s352 = int_to_ptr.vmem [resolvable:$true] %s351
          %357 = dma.hbm_to_vmem [thread:$0]  %s350, 256, %s352, %s341, 64, 64, 4
        $region44: #{tpu_custom_call.1} parent=35 // pred_fallthru
          _
        // Predicated region
        $region45: #{tpu_custom_call.1} parent=35 // pred_check
          %p358 = pneg %p154
        $region46: #{tpu_custom_call.1} parent=35 // pred_check_branch
          %360 = sbr.rel (%p358) target = $region48
        $region47: #{tpu_custom_call.1} parent=35 // pred_region
          %p361 = scmp.lt.s32.totalorder %s19, 1
          %s362 = scalar_select %p361, %s19, 1
          %s363 = smul.addr %s362, 4
          %s364 = smul.addr %s363, 4
          %s365 = scalar_lea.vmem %s5, %s364
        $region48: #{tpu_custom_call.1} parent=35 // pred_fallthru
          _
        // Predicated region
        $region49: #{tpu_custom_call.1} parent=35 // pred_check
          %p366 = pneg %p180
        $region50: #{tpu_custom_call.1} parent=35 // pred_check_branch
          %368 = sbr.rel (%p366) target = $region52
        $region51: #{tpu_custom_call.1} parent=35 // pred_region
          %p369 = scmp.lt.s32.totalorder %s19, 1
          %s370 = scalar_select %p369, %s19, 1
          %s371 = smul.addr %s370, 8
          %s372 = smul.addr %s371, 4
          %s373 = scalar_lea.vmem %s6, %s372
        $region52: #{tpu_custom_call.1} parent=35 // pred_fallthru
          _
        // Predicated region
        $region53: #{tpu_custom_call.1} parent=35 // pred_check
          %p374 = pneg %p206
        $region54: #{tpu_custom_call.1} parent=35 // pred_check_branch
          %376 = sbr.rel (%p374) target = $region56
        $region55: #{tpu_custom_call.1} parent=35 // pred_region
          %s377 = sand.u32 %s19, 1
          %s378 = scalar_lea.sflag [#allocation4], %s377
          %s379 = sand.u32 %s196, 1
          %s380 = smul.addr %s379, 2
          %s381 = scalar_lea.vmem [#allocation9], %s380
          %s383 = ssub.s32 32, 32
          %384 = vsyncadd %s378, %s383
          %s385 = smul.addr %s19, 32
          %s386 = scalar_lea.hbm %s7, %s385
          %s388 = sshll.u32 %s381, 4
          %s389 = int_to_ptr.vmem [resolvable:$true] %s388
          %391 = dma.hbm_to_vmem [thread:$0]  %s386, 32, %s389, %s378
        $region56: #{tpu_custom_call.1} parent=35 // pred_fallthru
          _
      $region36: #{tpu_custom_call.1} parent=5 // pred_fallthru
        _
      %p392 = scmp.le.s32.totalorder 1, %s19
      %p393 = scmp.lt.s32.totalorder %s19, 3
      %p394 = pnand %p392, %p393
      %p395 = pneg %p394
      // Predicated region
      $region57: #{tpu_custom_call.1} parent=5 // pred_check
        _
      $region58: #{tpu_custom_call.1} parent=5 // pred_check_branch
        %397 = sbr.rel (%p394) target = $region60
      $region59: #{tpu_custom_call.1} parent=5 // pred_region
        %s398 = ssub.s32 %s19, 1
        // Predicated region
        $region61: #{tpu_custom_call.1} parent=59 // pred_check
          %p399 = pneg %p40
        $region62: #{tpu_custom_call.1} parent=59 // pred_check_branch
          %401 = sbr.rel (%p399) target = $region64
        $region63: #{tpu_custom_call.1} parent=59 // pred_region
          %402 = dma.done [#allocation4], 256
        $region64: #{tpu_custom_call.1} parent=59 // pred_fallthru
          _
        // Predicated region
        $region65: #{tpu_custom_call.1} parent=59 // pred_check
          %p403 = pneg %p82
        $region66: #{tpu_custom_call.1} parent=59 // pred_check_branch
          %405 = sbr.rel (%p403) target = $region68
        $region67: #{tpu_custom_call.1} parent=59 // pred_region
          %406 = dma.done [#allocation7], 256
        $region68: #{tpu_custom_call.1} parent=59 // pred_fallthru
          _
        %s407 = sand.u32 %s24, 1
        %s408 = scalar_lea.sflag [#allocation4], %s407
        %s409 = sand.u32 %s121, 1
        %s410 = smul.addr %s409, 16
        %s411 = scalar_lea.vmem [#allocation8], %s410
        // Predicated region
        $region69: #{tpu_custom_call.1} parent=59 // pred_check
          %p412 = pneg %p134
        $region70: #{tpu_custom_call.1} parent=59 // pred_check_branch
          %414 = sbr.rel (%p412) target = $region72
        $region71: #{tpu_custom_call.1} parent=59 // pred_region
          %415 = dma.done %s408, 256
        $region72: #{tpu_custom_call.1} parent=59 // pred_fallthru
          _
        %s416 = sand.u32 %s24, 1
        %s417 = scalar_lea.sflag [#allocation4], %s416
        %s418 = sand.u32 %s199, 1
        %s419 = smul.addr %s418, 2
        %s420 = scalar_lea.vmem [#allocation9], %s419
        // Predicated region
        $region73: #{tpu_custom_call.1} parent=59 // pred_check
          %p421 = pneg %p212
        $region74: #{tpu_custom_call.1} parent=59 // pred_check_branch
          %423 = sbr.rel (%p421) target = $region76
        $region75: #{tpu_custom_call.1} parent=59 // pred_region
          %424 = dma.done %s417, 32
        $region76: #{tpu_custom_call.1} parent=59 // pred_fallthru
          _
        %p425 = pneg %p40
        %p426 = pneg %p37
        %p427 = pneg %p61
        %p428 = pneg %p58
        %p429 = pneg %p82
        %p430 = pneg %p79
        %p431 = scmp.lt.s32.totalorder %s24, 1
        %s432 = scalar_select %p431, %s24, 1
        %s433 = smul.addr %s432, 4
        %s434 = smul.addr %s433, 4
        %s435 = scalar_lea.vmem %s3, %s434
        %p436 = pneg %p108
        %p437 = pneg %p105
        %s438 = sand.u32 %s24, 1
        %s439 = scalar_lea.sflag [#allocation4], %s438
        %s440 = sand.u32 %s121, 1
        %s441 = smul.addr %s440, 16
        %s442 = scalar_lea.vmem [#allocation8], %s441
        %p443 = pneg %p134
        %p444 = pneg %p131
        %p445 = scmp.lt.s32.totalorder %s24, 1
        %s446 = scalar_select %p445, %s24, 1
        %s447 = smul.addr %s446, 4
        %s448 = smul.addr %s447, 4
        %s449 = scalar_lea.vmem %s5, %s448
        %p450 = pneg %p160
        %p451 = pneg %p157
        %p452 = scmp.lt.s32.totalorder %s24, 1
        %s453 = scalar_select %p452, %s24, 1
        %s454 = smul.addr %s453, 8
        %s455 = smul.addr %s454, 4
        %s456 = scalar_lea.vmem %s6, %s455
        %p457 = pneg %p186
        %p458 = pneg %p183
        %s459 = sand.u32 %s24, 1
        %s460 = scalar_lea.sflag [#allocation4], %s459
        %s461 = sand.u32 %s199, 1
        %s462 = smul.addr %s461, 2
        %s463 = scalar_lea.vmem [#allocation9], %s462
        %p464 = pneg %p212
        %p465 = pneg %p209
        %p466 = pneg %p233
        %p467 = pneg %p230
        %p468 = pneg %p254
        %p469 = pneg %p251
        %p470 = pneg %p275
        %p471 = pneg %p272
        %p472 = scmp.lt.s32.totalorder %s24, 1
        %s473 = scalar_select %p472, %s24, 1
        %s474 = smul.addr %s473, 4
        %s475 = smul.addr %s474, 4
        %s476 = scalar_lea.vmem %s3, %s475
        %p477 = scmp.lt.s32.totalorder %s24, 1
        %s478 = scalar_select %p477, %s24, 1
        %s479 = smul.addr %s478, 4
        %s480 = smul.addr %s479, 4
        %s481 = scalar_lea.vmem %s5, %s480
        %p482 = scmp.lt.s32.totalorder %s24, 1
        %s483 = scalar_select %p482, %s24, 1
        %s484 = smul.addr %s483, 8
        %s485 = smul.addr %s484, 4
        %s486 = scalar_lea.vmem %s6, %s485
        %p488 = scmp.eq.s32.totalorder %s24, 0
        // Predicated region
        $region77: #{tpu_custom_call.1} parent=59 // pred_check
          %p489 = pneg %p488
        $region78: #{tpu_custom_call.1} parent=59 // pred_check_branch
          %491 = sbr.rel (%p489) target = $region80
        $region79: #{tpu_custom_call.1} parent=59 // pred_region
          %v492 = vld [vmem:[#allocation3] sm:$0xff]
          %v493 = vld [vmem:[#allocation3 + $0x8] sm:$0xff]
          %vm494 = vcmask 261120
          %495 = vst.msk [vmem:[#allocation2] sm:$0xff] %vm494, %v492
          %496 = vst.msk [vmem:[#allocation2 + $0x8] sm:$0xff] %vm494, %v493
        $region80: #{tpu_custom_call.1} parent=59 // pred_fallthru
          _
        %v497 = vld [vmem:[#allocation2] sm:$0xff]
        %v498 = vld [vmem:[#allocation2 + $0x8] sm:$0xff]
        %v499 = vld [vmem:[%s1] sm:$0xff]
        %v500 = vld [vmem:[%s1 + $0x8] sm:$0xff]
        %s501 = scalar_lea.vmem %s1, 16
        %v502 = vld [vmem:[%s501] sm:$0xff]
        %v503 = vld [vmem:[%s501 + $0x8] sm:$0xff]
        %s504 = scalar_lea.vmem %s1, 32
        %v505 = vld [vmem:[%s504] sm:$0xff]
        %v506 = vld [vmem:[%s504 + $0x8] sm:$0xff]
        %v507 = vld [vmem:[#allocation6] sm:$0xff]
        %v508 = vld [vmem:[#allocation6 + $0x8] sm:$0xff]
        %v509 = vld [vmem:[%s420] sm:$0x3]
        %v510 = vld [vmem:[%s411] sm:$0xf]
        %v511 = vld [vmem:[%s411 + $0x4] sm:$0xf]
        %v512 = vld [vmem:[%s411 + $0x8] sm:$0xf]
        %v513 = vld [vmem:[%s411 + $0xc] sm:$0xf]
        %v514 = vmul.f32 %v497, %v497
        %v515 = vmul.f32 %v498, %v498
        %vm516 = vcmask 261120
        %v517 = vsel %vm516, %v514, 0.0
        %518 = vadd.xlane.f32.xlu0 %v517
        %v519 = vpop.xlane.xlu0 %518
        %v520 = vsel %vm516, %v515, 0.0
        %521 = vadd.xlane.f32.xlu0 %v520
        %v522 = vpop.xlane.xlu0 %521
        %v523 = vrcp.pop 32.0
        %v524 = vmul.f32 %v519, %v523
        %v525 = vmul.f32 %v522, %v523
        %v526 = vadd.f32 %v524, 1e-06
        %v527 = vadd.f32 %v525, 1e-06
        %v528 = vrsqrt.pop %v526
        %v529 = vrsqrt.pop %v527
        %v530 = vmul.f32 %v497, %v528
        %v531 = vmul.f32 %v498, %v529
        %v532 = vlaneseq
        %v533 = vshrl.u32 %v532, 7
        %v534 = vsub.s32 0, %v533
        %v535 = vrot.slane %v509, %v534
        %v536 = vmul.f32 %v530, %v535
        %v537 = vmul.f32 %v531, %v535
        %v538 = vpack.c.bf16 %v537, %v536
        %v539 = vld [vmem:[%s476] sm:$0xf]
        %v540 = vld [vmem:[%s476 + $0x4] sm:$0xf]
        %v541 = vld [vmem:[%s476 + $0x8] sm:$0xf]
        %v542 = vld [vmem:[%s476 + $0xc] sm:$0xf]
        %v547 = vunpack.c.l.b16 %v539
        %v548 = vunpack.c.l.b16 %v540
        %v549 = vunpack.c.l.b16 %v541
        %v550 = vunpack.c.l.b16 %v542
        %v551 = vpack.c.b16 %v548, %v547
        %v552 = vpack.c.b16 %v550, %v549
        %v556 = vsel %vm516, %v538, 0
        %558 = vmatprep.subr.bf16.mxu0 0
        %559 = vmatpush1.bf16.msra.mxu0 %v551
        %560 = vmatprep.subr.bf16.mxu0 0
        %561 = vmatpush1.bf16.msra.mxu0 %v552
        %562 = vmatprep.subr.bf16.mxu0 0
        %563 = vmatpush1.bf16.msra.mxu0 0
        %564 = vmatprep.subr.bf16.mxu0 0
        %565 = vmatpush1.bf16.msra.mxu0 0
        %566 = vmatprep.subr.bf16.mxu0 0
        %567 = vmatpush1.bf16.msra.mxu0 0
        %568 = vmatprep.subr.bf16.mxu0 0
        %569 = vmatpush1.bf16.msra.mxu0 0
        %570 = vmatprep.subr.bf16.mxu0 0
        %571 = vmatpush1.bf16.msra.mxu0 0
        %572 = vmatprep.subr.bf16.mxu0 0
        %573 = vmatpush1.bf16.msra.mxu0 0
        %574 = vmatprep.subr.bf16.mxu0 0
        %575 = vmatpush1.bf16.msra.mxu0 0
        %576 = vmatprep.subr.bf16.mxu0 0
        %577 = vmatpush1.bf16.msra.mxu0 0
        %578 = vmatprep.subr.bf16.mxu0 0
        %579 = vmatpush1.bf16.msra.mxu0 0
        %580 = vmatprep.subr.bf16.mxu0 0
        %581 = vmatpush1.bf16.msra.mxu0 0
        %582 = vmatprep.subr.bf16.mxu0 0
        %583 = vmatpush1.bf16.msra.mxu0 0
        %584 = vmatprep.subr.bf16.mxu0 0
        %585 = vmatpush1.bf16.msra.mxu0 0
        %586 = vmatprep.subr.bf16.mxu0 0
        %587 = vmatpush1.bf16.msra.mxu0 0
        %588 = vmatprep.subr.bf16.mxu0 0
        %589 = vmatpush1.bf16.msra.mxu0 0
        %590 = vmatprep.mubr.bf16.mxu0 0
        %591 = vmatmul.mubr.bf16.gmra.mrb[0].mxu0 %v556
        %v592 = vpop.f32.mrb[0].mxu0
        %v593 = vadd.f32 0.0, %v592
        %v594 = vpop.f32.mrb[0].mxu0
        %v595 = vpop.f32.mrb[0].mxu0
        %v596 = vadd.f32 0.0, %v595
        %v597 = vpop.f32.mrb[0].mxu0
        %598 = vdwg.mxu0
        %v599 = vmul.f32 %v593, 0.35355338
        %v600 = vmul.f32 %v596, 0.35355338
        %v601 = vpack.c.bf16 %v596, %v593
        %v602 = vmul.f32 %v599, %v499
        %v603 = vmul.f32 %v600, %v500
        %606 = vrot.lane.b32.xlu0 %v599, 127
        %v607 = vpop.permute.xlu0 %606
        %608 = vrot.lane.b32.xlu0 %v600, 127
        %v609 = vpop.permute.xlu0 %608
        %612 = vrot.lane.b32.xlu0 %v599, 31
        %v613 = vpop.permute.xlu0 %612
        %614 = vrot.lane.b32.xlu0 %v600, 31
        %v615 = vpop.permute.xlu0 %614
        %vm618 = vcmask 252928
        %v619 = vsel %vm618, %v607, %v613
        %v620 = vsel %vm618, %v609, %v615
        %v621 = vmul.f32 %v619, %v502
        %v622 = vmul.f32 %v620, %v503
        %v623 = vadd.f32 %v602, %v621
        %v624 = vadd.f32 %v603, %v622
        %625 = vrot.lane.b32.xlu0 %v599, 97
        %v626 = vpop.permute.xlu0 %625
        %627 = vrot.lane.b32.xlu0 %v600, 97
        %v628 = vpop.permute.xlu0 %627
        %631 = vrot.lane.b32.xlu0 %v599, 1
        %v632 = vpop.permute.xlu0 %631
        %633 = vrot.lane.b32.xlu0 %v600, 1
        %v634 = vpop.permute.xlu0 %633
        %vm637 = vcmask 7168
        %v638 = vsel %vm637, %v626, %v632
        %v639 = vsel %vm637, %v628, %v634
        %v640 = vmul.f32 %v638, %v505
        %v641 = vmul.f32 %v639, %v506
        %v642 = vadd.f32 %v623, %v640
        %v643 = vadd.f32 %v624, %v641
        %v644 = vpack.c.bf16 %v643, %v642
        %647 = vrot.lane.b32.xlu0 %v499, 32
        %v648 = vpop.permute.xlu0 %647
        %649 = vrot.lane.b32.xlu0 %v500, 32
        %v650 = vpop.permute.xlu0 %649
        %v653 = vmul.f32 %v593, %v648
        %v654 = vmul.f32 %v596, %v650
        %657 = vrot.lane.b32.xlu0 %v593, 95
        %v658 = vpop.permute.xlu0 %657
        %659 = vrot.lane.b32.xlu0 %v596, 95
        %v660 = vpop.permute.xlu0 %659
        %663 = vrot.lane.b32.xlu0 %v593, 127
        %v664 = vpop.permute.xlu0 %663
        %665 = vrot.lane.b32.xlu0 %v596, 127
        %v666 = vpop.permute.xlu0 %665
        %v669 = vsel %vm618, %v658, %v664
        %v670 = vsel %vm618, %v660, %v666
        %v671 = vmul.f32 %v669, %v502
        %v672 = vmul.f32 %v670, %v503
        %675 = vrot.lane.b32.xlu0 %v671, 32
        %v676 = vpop.permute.xlu0 %675
        %677 = vrot.lane.b32.xlu0 %v672, 32
        %v678 = vpop.permute.xlu0 %677
        %v681 = vadd.f32 %v653, %v676
        %v682 = vadd.f32 %v654, %v678
        %683 = vrot.lane.b32.xlu0 %v593, 65
        %v684 = vpop.permute.xlu0 %683
        %685 = vrot.lane.b32.xlu0 %v596, 65
        %v686 = vpop.permute.xlu0 %685
        %689 = vrot.lane.b32.xlu0 %v593, 97
        %v690 = vpop.permute.xlu0 %689
        %691 = vrot.lane.b32.xlu0 %v596, 97
        %v692 = vpop.permute.xlu0 %691
        %v695 = vsel %vm637, %v684, %v690
        %v696 = vsel %vm637, %v686, %v692
        %v697 = vmul.f32 %v695, %v505
        %v698 = vmul.f32 %v696, %v506
        %701 = vrot.lane.b32.xlu0 %v697, 32
        %v702 = vpop.permute.xlu0 %701
        %703 = vrot.lane.b32.xlu0 %v698, 32
        %v704 = vpop.permute.xlu0 %703
        %v707 = vadd.f32 %v681, %v702
        %v708 = vadd.f32 %v682, %v704
        %v709 = vpack.c.bf16 %v708, %v707
        %711 = vrot.lane.b32.xlu0 %v709, 96
        %v712 = vpop.permute.xlu0 %711
        %vm713 = vcmask 64512
        %v715 = vsel %vm713, %v644, 0
        %v718 = vsel %vm713, %v712, 0
        %720 = vmatprep.subr.bf16.mxu0 0
        %721 = vmatpush1.bf16.xpose.msra.mxu0 %v718
        %722 = vmatprep.subr.bf16.mxu0 0
        %723 = vmatpush1.bf16.xpose.msra.mxu0 0
        %724 = vmatprep.subr.bf16.mxu0 0
        %725 = vmatpush1.bf16.xpose.msra.mxu0 0
        %726 = vmatprep.subr.bf16.mxu0 0
        %727 = vmatpush1.bf16.xpose.msra.mxu0 0
        %728 = vmatprep.subr.bf16.mxu0 0
        %729 = vmatpush1.bf16.xpose.msra.mxu0 0
        %730 = vmatprep.subr.bf16.mxu0 0
        %731 = vmatpush1.bf16.xpose.msra.mxu0 0
        %732 = vmatprep.subr.bf16.mxu0 0
        %733 = vmatpush1.bf16.xpose.msra.mxu0 0
        %734 = vmatprep.subr.bf16.mxu0 0
        %735 = vmatpush1.bf16.xpose.msra.mxu0 0
        %736 = vmatprep.subr.bf16.mxu0 0
        %737 = vmatpush1.bf16.xpose.msra.mxu0 0
        %738 = vmatprep.subr.bf16.mxu0 0
        %739 = vmatpush1.bf16.xpose.msra.mxu0 0
        %740 = vmatprep.subr.bf16.mxu0 0
        %741 = vmatpush1.bf16.xpose.msra.mxu0 0
        %742 = vmatprep.subr.bf16.mxu0 0
        %743 = vmatpush1.bf16.xpose.msra.mxu0 0
        %744 = vmatprep.subr.bf16.mxu0 0
        %745 = vmatpush1.bf16.xpose.msra.mxu0 0
        %746 = vmatprep.subr.bf16.mxu0 0
        %747 = vmatpush1.bf16.xpose.msra.mxu0 0
        %748 = vmatprep.subr.bf16.mxu0 0
        %749 = vmatpush1.bf16.xpose.msra.mxu0 0
        %750 = vmatprep.subr.bf16.mxu0 0
        %751 = vmatpush1.bf16.xpose.msra.mxu0 0
        %752 = vmatprep.mubr.bf16.mxu0 0
        %753 = vmatmul.mubr.bf16.gmra.mrb[0].mxu0 %v715
        %v754 = vpop.f32.mrb[0].mxu0
        %v755 = vadd.f32 %v507, %v754
        %v756 = vpop.f32.mrb[0].mxu0
        %v757 = vpop.f32.mrb[0].mxu0
        %v758 = vadd.f32 %v508, %v757
        %v759 = vpop.f32.mrb[0].mxu0
        %760 = vdwg.mxu0
        %vm761 = vcmask 130048
        %v762 = vsel %vm761, %v755, -inf
        %763 = vmax.xlane.f32.xlu0 %v762
        %v764 = vpop.xlane.xlu0 %763
        %v765 = vsel %vm761, %v758, -inf
        %766 = vmax.xlane.f32.xlu0 %v765
        %v767 = vpop.xlane.xlu0 %766
        %v768 = vsub.f32 %v755, %v764
        %v769 = vsub.f32 %v758, %v767
        %v770 = vmul.f32 %v768, 1.442695
        %v771 = vpow.pop %v770
        %v772 = vmul.f32 %v769, 1.442695
        %v773 = vpow.pop %v772
        %v774 = vsel %vm761, %v771, 0.0
        %775 = vadd.xlane.f32.xlu0 %v774
        %v776 = vpop.xlane.xlu0 %775
        %v777 = vsel %vm761, %v773, 0.0
        %778 = vadd.xlane.f32.xlu0 %v777
        %v779 = vpop.xlane.xlu0 %778
        %v780 = vrcp.pop %v776
        %v781 = vmul.f32 %v771, %v780
        %v782 = vrcp.pop %v779
        %v783 = vmul.f32 %v773, %v782
        %v784 = vpack.c.bf16 %v783, %v781
        %786 = vrot.lane.b32.xlu0 %v601, 64
        %v787 = vpop.permute.xlu0 %786
        %v790 = vsel %vm761, %v784, 0
        %792 = vmatprep.subr.bf16.mxu0 0
        %793 = vmatpush1.bf16.msra.mxu0 %v787
        %794 = vmatprep.subr.bf16.mxu0 0
        %795 = vmatpush1.bf16.msra.mxu0 0
        %796 = vmatprep.subr.bf16.mxu0 0
        %797 = vmatpush1.bf16.msra.mxu0 0
        %798 = vmatprep.subr.bf16.mxu0 0
        %799 = vmatpush1.bf16.msra.mxu0 0
        %800 = vmatprep.subr.bf16.mxu0 0
        %801 = vmatpush1.bf16.msra.mxu0 0
        %802 = vmatprep.subr.bf16.mxu0 0
        %803 = vmatpush1.bf16.msra.mxu0 0
        %804 = vmatprep.subr.bf16.mxu0 0
        %805 = vmatpush1.bf16.msra.mxu0 0
        %806 = vmatprep.subr.bf16.mxu0 0
        %807 = vmatpush1.bf16.msra.mxu0 0
        %808 = vmatprep.subr.bf16.mxu0 0
        %809 = vmatpush1.bf16.msra.mxu0 0
        %810 = vmatprep.subr.bf16.mxu0 0
        %811 = vmatpush1.bf16.msra.mxu0 0
        %812 = vmatprep.subr.bf16.mxu0 0
        %813 = vmatpush1.bf16.msra.mxu0 0
        %814 = vmatprep.subr.bf16.mxu0 0
        %815 = vmatpush1.bf16.msra.mxu0 0
        %816 = vmatprep.subr.bf16.mxu0 0
        %817 = vmatpush1.bf16.msra.mxu0 0
        %818 = vmatprep.subr.bf16.mxu0 0
        %819 = vmatpush1.bf16.msra.mxu0 0
        %820 = vmatprep.subr.bf16.mxu0 0
        %821 = vmatpush1.bf16.msra.mxu0 0
        %822 = vmatprep.subr.bf16.mxu0 0
        %823 = vmatpush1.bf16.msra.mxu0 0
        %824 = vmatprep.mubr.bf16.mxu0 0
        %825 = vmatmul.mubr.bf16.gmra.mrb[0].mxu0 %v790
        %v826 = vpop.f32.mrb[0].mxu0
        %v827 = vadd.f32 0.0, %v826
        %v828 = vpop.f32.mrb[0].mxu0
        %v829 = vpop.f32.mrb[0].mxu0
        %v830 = vadd.f32 0.0, %v829
        %v831 = vpop.f32.mrb[0].mxu0
        %832 = vdwg.mxu0
        %v833 = vpack.c.bf16 %v830, %v827
        %835 = vrot.lane.b32.xlu0 %v644, 120
        %v836 = vpop.permute.xlu0 %835
        %837 = vrot.lane.b32.xlu0 %v709, 88
        %v838 = vpop.permute.xlu0 %837
        %v840 = vsel %vm713, %v836, 0
        %v843 = vsel %vm713, %v838, 0
        %845 = vmatprep.subr.bf16.mxu0 0
        %846 = vmatpush1.bf16.xpose.msra.mxu0 %v843
        %847 = vmatprep.subr.bf16.mxu0 0
        %848 = vmatpush1.bf16.xpose.msra.mxu0 0
        %849 = vmatprep.subr.bf16.mxu0 0
        %850 = vmatpush1.bf16.xpose.msra.mxu0 0
        %851 = vmatprep.subr.bf16.mxu0 0
        %852 = vmatpush1.bf16.xpose.msra.mxu0 0
        %853 = vmatprep.subr.bf16.mxu0 0
        %854 = vmatpush1.bf16.xpose.msra.mxu0 0
        %855 = vmatprep.subr.bf16.mxu0 0
        %856 = vmatpush1.bf16.xpose.msra.mxu0 0
        %857 = vmatprep.subr.bf16.mxu0 0
        %858 = vmatpush1.bf16.xpose.msra.mxu0 0
        %859 = vmatprep.subr.bf16.mxu0 0
        %860 = vmatpush1.bf16.xpose.msra.mxu0 0
        %861 = vmatprep.subr.bf16.mxu0 0
        %862 = vmatpush1.bf16.xpose.msra.mxu0 0
        %863 = vmatprep.subr.bf16.mxu0 0
        %864 = vmatpush1.bf16.xpose.msra.mxu0 0
        %865 = vmatprep.subr.bf16.mxu0 0
        %866 = vmatpush1.bf16.xpose.msra.mxu0 0
        %867 = vmatprep.subr.bf16.mxu0 0
        %868 = vmatpush1.bf16.xpose.msra.mxu0 0
        %869 = vmatprep.subr.bf16.mxu0 0
        %870 = vmatpush1.bf16.xpose.msra.mxu0 0
        %871 = vmatprep.subr.bf16.mxu0 0
        %872 = vmatpush1.bf16.xpose.msra.mxu0 0
        %873 = vmatprep.subr.bf16.mxu0 0
        %874 = vmatpush1.bf16.xpose.msra.mxu0 0
        %875 = vmatprep.subr.bf16.mxu0 0
        %876 = vmatpush1.bf16.xpose.msra.mxu0 0
        %877 = vmatprep.mubr.bf16.mxu0 0
        %878 = vmatmul.mubr.bf16.gmra.mrb[0].mxu0 %v840
        %v879 = vpop.f32.mrb[0].mxu0
        %v880 = vadd.f32 %v507, %v879
        %v881 = vpop.f32.mrb[0].mxu0
        %v882 = vpop.f32.mrb[0].mxu0
        %v883 = vadd.f32 %v508, %v882
        %v884 = vpop.f32.mrb[0].mxu0
        %885 = vdwg.mxu0
        %v886 = vsel %vm761, %v880, -inf
        %887 = vmax.xlane.f32.xlu0 %v886
        %v888 = vpop.xlane.xlu0 %887
        %v889 = vsel %vm761, %v883, -inf
        %890 = vmax.xlane.f32.xlu0 %v889
        %v891 = vpop.xlane.xlu0 %890
        %v892 = vsub.f32 %v880, %v888
        %v893 = vsub.f32 %v883, %v891
        %v894 = vmul.f32 %v892, 1.442695
        %v895 = vpow.pop %v894
        %v896 = vmul.f32 %v893, 1.442695
        %v897 = vpow.pop %v896
        %v898 = vsel %vm761, %v895, 0.0
        %899 = vadd.xlane.f32.xlu0 %v898
        %v900 = vpop.xlane.xlu0 %899
        %v901 = vsel %vm761, %v897, 0.0
        %902 = vadd.xlane.f32.xlu0 %v901
        %v903 = vpop.xlane.xlu0 %902
        %v904 = vrcp.pop %v900
        %v905 = vmul.f32 %v895, %v904
        %v906 = vrcp.pop %v903
        %v907 = vmul.f32 %v897, %v906
        %v908 = vpack.c.bf16 %v907, %v905
        %909 = vrot.lane.b32.xlu0 %v601, 56
        %v910 = vpop.permute.xlu0 %909
        %v913 = vsel %vm761, %v908, 0
        %915 = vmatprep.subr.bf16.mxu0 0
        %916 = vmatpush1.bf16.msra.mxu0 %v910
        %917 = vmatprep.subr.bf16.mxu0 0
        %918 = vmatpush1.bf16.msra.mxu0 0
        %919 = vmatprep.subr.bf16.mxu0 0
        %920 = vmatpush1.bf16.msra.mxu0 0
        %921 = vmatprep.subr.bf16.mxu0 0
        %922 = vmatpush1.bf16.msra.mxu0 0
        %923 = vmatprep.subr.bf16.mxu0 0
        %924 = vmatpush1.bf16.msra.mxu0 0
        %925 = vmatprep.subr.bf16.mxu0 0
        %926 = vmatpush1.bf16.msra.mxu0 0
        %927 = vmatprep.subr.bf16.mxu0 0
        %928 = vmatpush1.bf16.msra.mxu0 0
        %929 = vmatprep.subr.bf16.mxu0 0
        %930 = vmatpush1.bf16.msra.mxu0 0
        %931 = vmatprep.subr.bf16.mxu0 0
        %932 = vmatpush1.bf16.msra.mxu0 0
        %933 = vmatprep.subr.bf16.mxu0 0
        %934 = vmatpush1.bf16.msra.mxu0 0
        %935 = vmatprep.subr.bf16.mxu0 0
        %936 = vmatpush1.bf16.msra.mxu0 0
        %937 = vmatprep.subr.bf16.mxu0 0
        %938 = vmatpush1.bf16.msra.mxu0 0
        %939 = vmatprep.subr.bf16.mxu0 0
        %940 = vmatpush1.bf16.msra.mxu0 0
        %941 = vmatprep.subr.bf16.mxu0 0
        %942 = vmatpush1.bf16.msra.mxu0 0
        %943 = vmatprep.subr.bf16.mxu0 0
        %944 = vmatpush1.bf16.msra.mxu0 0
        %945 = vmatprep.subr.bf16.mxu0 0
        %946 = vmatpush1.bf16.msra.mxu0 0
        %947 = vmatprep.mubr.bf16.mxu0 0
        %948 = vmatmul.mubr.bf16.gmra.mrb[0].mxu0 %v913
        %v949 = vpop.f32.mrb[0].mxu0
        %v950 = vadd.f32 0.0, %v949
        %v951 = vpop.f32.mrb[0].mxu0
        %v952 = vpop.f32.mrb[0].mxu0
        %v953 = vadd.f32 0.0, %v952
        %v954 = vpop.f32.mrb[0].mxu0
        %955 = vdwg.mxu0
        %v956 = vpack.c.bf16 %v953, %v950
        %v958 = vsel %vm713, %v956, 0
        %vm960 = vcmask 1043456
        %v962 = vsel %vm960, %v511, 0
        %964 = vmatprep.subr.bf16.mxu0 0
        %965 = vmatpush1.bf16.msra.mxu0 %v962
        %966 = vmatprep.subr.bf16.mxu0 0
        %967 = vmatpush1.bf16.msra.mxu0 0
        %968 = vmatprep.subr.bf16.mxu0 0
        %969 = vmatpush1.bf16.msra.mxu0 0
        %970 = vmatprep.subr.bf16.mxu0 0
        %971 = vmatpush1.bf16.msra.mxu0 0
        %972 = vmatprep.subr.bf16.mxu0 0
        %973 = vmatpush1.bf16.msra.mxu0 0
        %974 = vmatprep.subr.bf16.mxu0 0
        %975 = vmatpush1.bf16.msra.mxu0 0
        %976 = vmatprep.subr.bf16.mxu0 0
        %977 = vmatpush1.bf16.msra.mxu0 0
        %978 = vmatprep.subr.bf16.mxu0 0
        %979 = vmatpush1.bf16.msra.mxu0 0
        %980 = vmatprep.subr.bf16.mxu0 0
        %981 = vmatpush1.bf16.msra.mxu0 0
        %982 = vmatprep.subr.bf16.mxu0 0
        %983 = vmatpush1.bf16.msra.mxu0 0
        %984 = vmatprep.subr.bf16.mxu0 0
        %985 = vmatpush1.bf16.msra.mxu0 0
        %986 = vmatprep.subr.bf16.mxu0 0
        %987 = vmatpush1.bf16.msra.mxu0 0
        %988 = vmatprep.subr.bf16.mxu0 0
        %989 = vmatpush1.bf16.msra.mxu0 0
        %990 = vmatprep.subr.bf16.mxu0 0
        %991 = vmatpush1.bf16.msra.mxu0 0
        %992 = vmatprep.subr.bf16.mxu0 0
        %993 = vmatpush1.bf16.msra.mxu0 0
        %994 = vmatprep.subr.bf16.mxu0 0
        %995 = vmatpush1.bf16.msra.mxu0 0
        %996 = vmatprep.mubr.bf16.mxu0 0
        %997 = vmatmul.mubr.bf16.gmra.mrb[0].mxu0 %v958
        %v998 = vpop.f32.mrb[0].mxu0
        %v999 = vadd.f32 0.0, %v998
        %v1000 = vpop.f32.mrb[0].mxu0
        %v1001 = vpop.f32.mrb[0].mxu0
        %v1002 = vadd.f32 0.0, %v1001
        %v1003 = vpop.f32.mrb[0].mxu0
        %1004 = vdwg.mxu0
        %v1006 = vsel %vm713, %v833, 0
        %v1009 = vsel %vm960, %v510, 0
        %1011 = vmatprep.subr.bf16.mxu0 0
        %1012 = vmatpush1.bf16.msra.mxu0 %v1009
        %1013 = vmatprep.subr.bf16.mxu0 0
        %1014 = vmatpush1.bf16.msra.mxu0 0
        %1015 = vmatprep.subr.bf16.mxu0 0
        %1016 = vmatpush1.bf16.msra.mxu0 0
        %1017 = vmatprep.subr.bf16.mxu0 0
        %1018 = vmatpush1.bf16.msra.mxu0 0
        %1019 = vmatprep.subr.bf16.mxu0 0
        %1020 = vmatpush1.bf16.msra.mxu0 0
        %1021 = vmatprep.subr.bf16.mxu0 0
        %1022 = vmatpush1.bf16.msra.mxu0 0
        %1023 = vmatprep.subr.bf16.mxu0 0
        %1024 = vmatpush1.bf16.msra.mxu0 0
        %1025 = vmatprep.subr.bf16.mxu0 0
        %1026 = vmatpush1.bf16.msra.mxu0 0
        %1027 = vmatprep.subr.bf16.mxu0 0
        %1028 = vmatpush1.bf16.msra.mxu0 0
        %1029 = vmatprep.subr.bf16.mxu0 0
        %1030 = vmatpush1.bf16.msra.mxu0 0
        %1031 = vmatprep.subr.bf16.mxu0 0
        %1032 = vmatpush1.bf16.msra.mxu0 0
        %1033 = vmatprep.subr.bf16.mxu0 0
        %1034 = vmatpush1.bf16.msra.mxu0 0
        %1035 = vmatprep.subr.bf16.mxu0 0
        %1036 = vmatpush1.bf16.msra.mxu0 0
        %1037 = vmatprep.subr.bf16.mxu0 0
        %1038 = vmatpush1.bf16.msra.mxu0 0
        %1039 = vmatprep.subr.bf16.mxu0 0
        %1040 = vmatpush1.bf16.msra.mxu0 0
        %1041 = vmatprep.subr.bf16.mxu0 0
        %1042 = vmatpush1.bf16.msra.mxu0 0
        %1043 = vmatprep.mubr.bf16.mxu0 0
        %1044 = vmatmul.mubr.bf16.gmra.mrb[0].mxu0 %v1006
        %v1045 = vpop.f32.mrb[0].mxu0
        %v1046 = vadd.f32 %v999, %v1045
        %v1047 = vpop.f32.mrb[0].mxu0
        %v1048 = vpop.f32.mrb[0].mxu0
        %v1049 = vadd.f32 %v1002, %v1048
        %v1050 = vpop.f32.mrb[0].mxu0
        %1051 = vdwg.mxu0
        %1052 = vrot.lane.b32.xlu0 %v644, 112
        %v1053 = vpop.permute.xlu0 %1052
        %1054 = vrot.lane.b32.xlu0 %v709, 80
        %v1055 = vpop.permute.xlu0 %1054
        %v1057 = vsel %vm713, %v1053, 0
        %v1060 = vsel %vm713, %v1055, 0
        %1062 = vmatprep.subr.bf16.mxu0 0
        %1063 = vmatpush1.bf16.xpose.msra.mxu0 %v1060
        %1064 = vmatprep.subr.bf16.mxu0 0
        %1065 = vmatpush1.bf16.xpose.msra.mxu0 0
        %1066 = vmatprep.subr.bf16.mxu0 0
        %1067 = vmatpush1.bf16.xpose.msra.mxu0 0
        %1068 = vmatprep.subr.bf16.mxu0 0
        %1069 = vmatpush1.bf16.xpose.msra.mxu0 0
        %1070 = vmatprep.subr.bf16.mxu0 0
        %1071 = vmatpush1.bf16.xpose.msra.mxu0 0
        %1072 = vmatprep.subr.bf16.mxu0 0
        %1073 = vmatpush1.bf16.xpose.msra.mxu0 0
        %1074 = vmatprep.subr.bf16.mxu0 0
        %1075 = vmatpush1.bf16.xpose.msra.mxu0 0
        %1076 = vmatprep.subr.bf16.mxu0 0
        %1077 = vmatpush1.bf16.xpose.msra.mxu0 0
        %1078 = vmatprep.subr.bf16.mxu0 0
        %1079 = vmatpush1.bf16.xpose.msra.mxu0 0
        %1080 = vmatprep.subr.bf16.mxu0 0
        %1081 = vmatpush1.bf16.xpose.msra.mxu0 0
        %1082 = vmatprep.subr.bf16.mxu0 0
        %1083 = vmatpush1.bf16.xpose.msra.mxu0 0
        %1084 = vmatprep.subr.bf16.mxu0 0
        %1085 = vmatpush1.bf16.xpose.msra.mxu0 0
        %1086 = vmatprep.subr.bf16.mxu0 0
        %1087 = vmatpush1.bf16.xpose.msra.mxu0 0
        %1088 = vmatprep.subr.bf16.mxu0 0
        %1089 = vmatpush1.bf16.xpose.msra.mxu0 0
        %1090 = vmatprep.subr.bf16.mxu0 0
        %1091 = vmatpush1.bf16.xpose.msra.mxu0 0
        %1092 = vmatprep.subr.bf16.mxu0 0
        %1093 = vmatpush1.bf16.xpose.msra.mxu0 0
        %1094 = vmatprep.mubr.bf16.mxu0 0
        %1095 = vmatmul.mubr.bf16.gmra.mrb[0].mxu0 %v1057
        %v1096 = vpop.f32.mrb[0].mxu0
        %v1097 = vadd.f32 %v507, %v1096
        %v1098 = vpop.f32.mrb[0].mxu0
        %v1099 = vpop.f32.mrb[0].mxu0
        %v1100 = vadd.f32 %v508, %v1099
        %v1101 = vpop.f32.mrb[0].mxu0
        %1102 = vdwg.mxu0
        %v1103 = vsel %vm761, %v1097, -inf
        %1104 = vmax.xlane.f32.xlu0 %v1103
        %v1105 = vpop.xlane.xlu0 %1104
        %v1106 = vsel %vm761, %v1100, -inf
        %1107 = vmax.xlane.f32.xlu0 %v1106
        %v1108 = vpop.xlane.xlu0 %1107
        %v1109 = vsub.f32 %v1097, %v1105
        %v1110 = vsub.f32 %v1100, %v1108
        %v1111 = vmul.f32 %v1109, 1.442695
        %v1112 = vpow.pop %v1111
        %v1113 = vmul.f32 %v1110, 1.442695
        %v1114 = vpow.pop %v1113
        %v1115 = vsel %vm761, %v1112, 0.0
        %1116 = vadd.xlane.f32.xlu0 %v1115
        %v1117 = vpop.xlane.xlu0 %1116
        %v1118 = vsel %vm761, %v1114, 0.0
        %1119 = vadd.xlane.f32.xlu0 %v1118
        %v1120 = vpop.xlane.xlu0 %1119
        %v1121 = vrcp.pop %v1117
        %v1122 = vmul.f32 %v1112, %v1121
        %v1123 = vrcp.pop %v1120
        %v1124 = vmul.f32 %v1114, %v1123
        %v1125 = vpack.c.bf16 %v1124, %v1122
        %1126 = vrot.lane.b32.xlu0 %v601, 48
        %v1127 = vpop.permute.xlu0 %1126
        %v1130 = vsel %vm761, %v1125, 0
        %1132 = vmatprep.subr.bf16.mxu0 0
        %1133 = vmatpush1.bf16.msra.mxu0 %v1127
        %1134 = vmatprep.subr.bf16.mxu0 0
        %1135 = vmatpush1.bf16.msra.mxu0 0
        %1136 = vmatprep.subr.bf16.mxu0 0
        %1137 = vmatpush1.bf16.msra.mxu0 0
        %1138 = vmatprep.subr.bf16.mxu0 0
        %1139 = vmatpush1.bf16.msra.mxu0 0
        %1140 = vmatprep.subr.bf16.mxu0 0
        %1141 = vmatpush1.bf16.msra.mxu0 0
        %1142 = vmatprep.subr.bf16.mxu0 0
        %1143 = vmatpush1.bf16.msra.mxu0 0
        %1144 = vmatprep.subr.bf16.mxu0 0
        %1145 = vmatpush1.bf16.msra.mxu0 0
        %1146 = vmatprep.subr.bf16.mxu0 0
        %1147 = vmatpush1.bf16.msra.mxu0 0
        %1148 = vmatprep.subr.bf16.mxu0 0
        %1149 = vmatpush1.bf16.msra.mxu0 0
        %1150 = vmatprep.subr.bf16.mxu0 0
        %1151 = vmatpush1.bf16.msra.mxu0 0
        %1152 = vmatprep.subr.bf16.mxu0 0
        %1153 = vmatpush1.bf16.msra.mxu0 0
        %1154 = vmatprep.subr.bf16.mxu0 0
        %1155 = vmatpush1.bf16.msra.mxu0 0
        %1156 = vmatprep.subr.bf16.mxu0 0
        %1157 = vmatpush1.bf16.msra.mxu0 0
        %1158 = vmatprep.subr.bf16.mxu0 0
        %1159 = vmatpush1.bf16.msra.mxu0 0
        %1160 = vmatprep.subr.bf16.mxu0 0
        %1161 = vmatpush1.bf16.msra.mxu0 0
        %1162 = vmatprep.subr.bf16.mxu0 0
        %1163 = vmatpush1.bf16.msra.mxu0 0
        %1164 = vmatprep.mubr.bf16.mxu0 0
        %1165 = vmatmul.mubr.bf16.gmra.mrb[0].mxu0 %v1130
        %v1166 = vpop.f32.mrb[0].mxu0
        %v1167 = vadd.f32 0.0, %v1166
        %v1168 = vpop.f32.mrb[0].mxu0
        %v1169 = vpop.f32.mrb[0].mxu0
        %v1170 = vadd.f32 0.0, %v1169
        %v1171 = vpop.f32.mrb[0].mxu0
        %1172 = vdwg.mxu0
        %v1173 = vpack.c.bf16 %v1170, %v1167
        %v1175 = vsel %vm713, %v1173, 0
        %v1178 = vsel %vm960, %v512, 0
        %1180 = vmatprep.subr.bf16.mxu0 0
        %1181 = vmatpush1.bf16.msra.mxu0 %v1178
        %1182 = vmatprep.subr.bf16.mxu0 0
        %1183 = vmatpush1.bf16.msra.mxu0 0
        %1184 = vmatprep.subr.bf16.mxu0 0
        %1185 = vmatpush1.bf16.msra.mxu0 0
        %1186 = vmatprep.subr.bf16.mxu0 0
        %1187 = vmatpush1.bf16.msra.mxu0 0
        %1188 = vmatprep.subr.bf16.mxu0 0
        %1189 = vmatpush1.bf16.msra.mxu0 0
        %1190 = vmatprep.subr.bf16.mxu0 0
        %1191 = vmatpush1.bf16.msra.mxu0 0
        %1192 = vmatprep.subr.bf16.mxu0 0
        %1193 = vmatpush1.bf16.msra.mxu0 0
        %1194 = vmatprep.subr.bf16.mxu0 0
        %1195 = vmatpush1.bf16.msra.mxu0 0
        %1196 = vmatprep.subr.bf16.mxu0 0
        %1197 = vmatpush1.bf16.msra.mxu0 0
        %1198 = vmatprep.subr.bf16.mxu0 0
        %1199 = vmatpush1.bf16.msra.mxu0 0
        %1200 = vmatprep.subr.bf16.mxu0 0
        %1201 = vmatpush1.bf16.msra.mxu0 0
        %1202 = vmatprep.subr.bf16.mxu0 0
        %1203 = vmatpush1.bf16.msra.mxu0 0
        %1204 = vmatprep.subr.bf16.mxu0 0
        %1205 = vmatpush1.bf16.msra.mxu0 0
        %1206 = vmatprep.subr.bf16.mxu0 0
        %1207 = vmatpush1.bf16.msra.mxu0 0
        %1208 = vmatprep.subr.bf16.mxu0 0
        %1209 = vmatpush1.bf16.msra.mxu0 0
        %1210 = vmatprep.subr.bf16.mxu0 0
        %1211 = vmatpush1.bf16.msra.mxu0 0
        %1212 = vmatprep.mubr.bf16.mxu0 0
        %1213 = vmatmul.mubr.bf16.gmra.mrb[0].mxu0 %v1175
        %v1214 = vpop.f32.mrb[0].mxu0
        %v1215 = vadd.f32 0.0, %v1214
        %v1216 = vpop.f32.mrb[0].mxu0
        %v1217 = vpop.f32.mrb[0].mxu0
        %v1218 = vadd.f32 0.0, %v1217
        %v1219 = vpop.f32.mrb[0].mxu0
        %1220 = vdwg.mxu0
        %v1221 = vadd.f32 %v1046, %v1215
        %v1222 = vadd.f32 %v1049, %v1218
        %1223 = vrot.lane.b32.xlu0 %v644, 104
        %v1224 = vpop.permute.xlu0 %1223
        %1225 = vrot.lane.b32.xlu0 %v709, 72
        %v1226 = vpop.permute.xlu0 %1225
        %v1228 = vsel %vm713, %v1224, 0
        %v1231 = vsel %vm713, %v1226, 0
        %1233 = vmatprep.subr.bf16.mxu0 0
        %1234 = vmatpush1.bf16.xpose.msra.mxu0 %v1231
        %1235 = vmatprep.subr.bf16.mxu0 0
        %1236 = vmatpush1.bf16.xpose.msra.mxu0 0
        %1237 = vmatprep.subr.bf16.mxu0 0
        %1238 = vmatpush1.bf16.xpose.msra.mxu0 0
        %1239 = vmatprep.subr.bf16.mxu0 0
        %1240 = vmatpush1.bf16.xpose.msra.mxu0 0
        %1241 = vmatprep.subr.bf16.mxu0 0
        %1242 = vmatpush1.bf16.xpose.msra.mxu0 0
        %1243 = vmatprep.subr.bf16.mxu0 0
        %1244 = vmatpush1.bf16.xpose.msra.mxu0 0
        %1245 = vmatprep.subr.bf16.mxu0 0
        %1246 = vmatpush1.bf16.xpose.msra.mxu0 0
        %1247 = vmatprep.subr.bf16.mxu0 0
        %1248 = vmatpush1.bf16.xpose.msra.mxu0 0
        %1249 = vmatprep.subr.bf16.mxu0 0
        %1250 = vmatpush1.bf16.xpose.msra.mxu0 0
        %1251 = vmatprep.subr.bf16.mxu0 0
        %1252 = vmatpush1.bf16.xpose.msra.mxu0 0
        %1253 = vmatprep.subr.bf16.mxu0 0
        %1254 = vmatpush1.bf16.xpose.msra.mxu0 0
        %1255 = vmatprep.subr.bf16.mxu0 0
        %1256 = vmatpush1.bf16.xpose.msra.mxu0 0
        %1257 = vmatprep.subr.bf16.mxu0 0
        %1258 = vmatpush1.bf16.xpose.msra.mxu0 0
        %1259 = vmatprep.subr.bf16.mxu0 0
        %1260 = vmatpush1.bf16.xpose.msra.mxu0 0
        %1261 = vmatprep.subr.bf16.mxu0 0
        %1262 = vmatpush1.bf16.xpose.msra.mxu0 0
        %1263 = vmatprep.subr.bf16.mxu0 0
        %1264 = vmatpush1.bf16.xpose.msra.mxu0 0
        %1265 = vmatprep.mubr.bf16.mxu0 0
        %1266 = vmatmul.mubr.bf16.gmra.mrb[0].mxu0 %v1228
        %v1267 = vpop.f32.mrb[0].mxu0
        %v1268 = vadd.f32 %v507, %v1267
        %v1269 = vpop.f32.mrb[0].mxu0
        %v1270 = vpop.f32.mrb[0].mxu0
        %v1271 = vadd.f32 %v508, %v1270
        %v1272 = vpop.f32.mrb[0].mxu0
        %1273 = vdwg.mxu0
        %v1274 = vsel %vm761, %v1268, -inf
        %1275 = vmax.xlane.f32.xlu0 %v1274
        %v1276 = vpop.xlane.xlu0 %1275
        %v1277 = vsel %vm761, %v1271, -inf
        %1278 = vmax.xlane.f32.xlu0 %v1277
        %v1279 = vpop.xlane.xlu0 %1278
        %v1280 = vsub.f32 %v1268, %v1276
        %v1281 = vsub.f32 %v1271, %v1279
        %v1282 = vmul.f32 %v1280, 1.442695
        %v1283 = vpow.pop %v1282
        %v1284 = vmul.f32 %v1281, 1.442695
        %v1285 = vpow.pop %v1284
        %v1286 = vsel %vm761, %v1283, 0.0
        %1287 = vadd.xlane.f32.xlu0 %v1286
        %v1288 = vpop.xlane.xlu0 %1287
        %v1289 = vsel %vm761, %v1285, 0.0
        %1290 = vadd.xlane.f32.xlu0 %v1289
        %v1291 = vpop.xlane.xlu0 %1290
        %v1292 = vrcp.pop %v1288
        %v1293 = vmul.f32 %v1283, %v1292
        %v1294 = vrcp.pop %v1291
        %v1295 = vmul.f32 %v1285, %v1294
        %v1296 = vpack.c.bf16 %v1295, %v1293
        %1297 = vrot.lane.b32.xlu0 %v601, 40
        %v1298 = vpop.permute.xlu0 %1297
        %v1301 = vsel %vm761, %v1296, 0
        %1303 = vmatprep.subr.bf16.mxu0 0
        %1304 = vmatpush1.bf16.msra.mxu0 %v1298
        %1305 = vmatprep.subr.bf16.mxu0 0
        %1306 = vmatpush1.bf16.msra.mxu0 0
        %1307 = vmatprep.subr.bf16.mxu0 0
        %1308 = vmatpush1.bf16.msra.mxu0 0
        %1309 = vmatprep.subr.bf16.mxu0 0
        %1310 = vmatpush1.bf16.msra.mxu0 0
        %1311 = vmatprep.subr.bf16.mxu0 0
        %1312 = vmatpush1.bf16.msra.mxu0 0
        %1313 = vmatprep.subr.bf16.mxu0 0
        %1314 = vmatpush1.bf16.msra.mxu0 0
        %1315 = vmatprep.subr.bf16.mxu0 0
        %1316 = vmatpush1.bf16.msra.mxu0 0
        %1317 = vmatprep.subr.bf16.mxu0 0
        %1318 = vmatpush1.bf16.msra.mxu0 0
        %1319 = vmatprep.subr.bf16.mxu0 0
        %1320 = vmatpush1.bf16.msra.mxu0 0
        %1321 = vmatprep.subr.bf16.mxu0 0
        %1322 = vmatpush1.bf16.msra.mxu0 0
        %1323 = vmatprep.subr.bf16.mxu0 0
        %1324 = vmatpush1.bf16.msra.mxu0 0
        %1325 = vmatprep.subr.bf16.mxu0 0
        %1326 = vmatpush1.bf16.msra.mxu0 0
        %1327 = vmatprep.subr.bf16.mxu0 0
        %1328 = vmatpush1.bf16.msra.mxu0 0
        %1329 = vmatprep.subr.bf16.mxu0 0
        %1330 = vmatpush1.bf16.msra.mxu0 0
        %1331 = vmatprep.subr.bf16.mxu0 0
        %1332 = vmatpush1.bf16.msra.mxu0 0
        %1333 = vmatprep.subr.bf16.mxu0 0
        %1334 = vmatpush1.bf16.msra.mxu0 0
        %1335 = vmatprep.mubr.bf16.mxu0 0
        %1336 = vmatmul.mubr.bf16.gmra.mrb[0].mxu0 %v1301
        %v1337 = vpop.f32.mrb[0].mxu0
        %v1338 = vadd.f32 0.0, %v1337
        %v1339 = vpop.f32.mrb[0].mxu0
        %v1340 = vpop.f32.mrb[0].mxu0
        %v1341 = vadd.f32 0.0, %v1340
        %v1342 = vpop.f32.mrb[0].mxu0
        %1343 = vdwg.mxu0
        %v1344 = vpack.c.bf16 %v1341, %v1338
        %v1346 = vsel %vm713, %v1344, 0
        %v1349 = vsel %vm960, %v513, 0
        %1351 = vmatprep.subr.bf16.mxu0 0
        %1352 = vmatpush1.bf16.msra.mxu0 %v1349
        %1353 = vmatprep.subr.bf16.mxu0 0
        %1354 = vmatpush1.bf16.msra.mxu0 0
        %1355 = vmatprep.subr.bf16.mxu0 0
        %1356 = vmatpush1.bf16.msra.mxu0 0
        %1357 = vmatprep.subr.bf16.mxu0 0
        %1358 = vmatpush1.bf16.msra.mxu0 0
        %1359 = vmatprep.subr.bf16.mxu0 0
        %1360 = vmatpush1.bf16.msra.mxu0 0
        %1361 = vmatprep.subr.bf16.mxu0 0
        %1362 = vmatpush1.bf16.msra.mxu0 0
        %1363 = vmatprep.subr.bf16.mxu0 0
        %1364 = vmatpush1.bf16.msra.mxu0 0
        %1365 = vmatprep.subr.bf16.mxu0 0
        %1366 = vmatpush1.bf16.msra.mxu0 0
        %1367 = vmatprep.subr.bf16.mxu0 0
        %1368 = vmatpush1.bf16.msra.mxu0 0
        %1369 = vmatprep.subr.bf16.mxu0 0
        %1370 = vmatpush1.bf16.msra.mxu0 0
        %1371 = vmatprep.subr.bf16.mxu0 0
        %1372 = vmatpush1.bf16.msra.mxu0 0
        %1373 = vmatprep.subr.bf16.mxu0 0
        %1374 = vmatpush1.bf16.msra.mxu0 0
        %1375 = vmatprep.subr.bf16.mxu0 0
        %1376 = vmatpush1.bf16.msra.mxu0 0
        %1377 = vmatprep.subr.bf16.mxu0 0
        %1378 = vmatpush1.bf16.msra.mxu0 0
        %1379 = vmatprep.subr.bf16.mxu0 0
        %1380 = vmatpush1.bf16.msra.mxu0 0
        %1381 = vmatprep.subr.bf16.mxu0 0
        %1382 = vmatpush1.bf16.msra.mxu0 0
        %1383 = vmatprep.mubr.bf16.mxu0 0
        %1384 = vmatmul.mubr.bf16.gmra.mrb[0].mxu0 %v1346
        %v1385 = vpop.f32.mrb[0].mxu0
        %v1386 = vadd.f32 0.0, %v1385
        %v1387 = vpop.f32.mrb[0].mxu0
        %v1388 = vpop.f32.mrb[0].mxu0
        %v1389 = vadd.f32 0.0, %v1388
        %v1390 = vpop.f32.mrb[0].mxu0
        %1391 = vdwg.mxu0
        %v1392 = vadd.f32 %v1221, %v1386
        %v1393 = vadd.f32 %v1222, %v1389
        %v1394 = vadd.f32 %v497, %v1392
        %v1395 = vadd.f32 %v498, %v1393
        %v1396 = vmul.f32 %v1394, %v1394
        %v1397 = vmul.f32 %v1395, %v1395
        %v1398 = vsel %vm516, %v1396, 0.0
        %1399 = vadd.xlane.f32.xlu0 %v1398
        %v1400 = vpop.xlane.xlu0 %1399
        %v1401 = vsel %vm516, %v1397, 0.0
        %1402 = vadd.xlane.f32.xlu0 %v1401
        %v1403 = vpop.xlane.xlu0 %1402
        %v1404 = vmul.f32 %v1400, %v523
        %v1405 = vmul.f32 %v1403, %v523
        %v1406 = vadd.f32 %v1404, 1e-06
        %v1407 = vadd.f32 %v1405, 1e-06
        %v1408 = vrsqrt.pop %v1406
        %v1409 = vrsqrt.pop %v1407
        %v1410 = vmul.f32 %v1394, %v1408
        %v1411 = vmul.f32 %v1395, %v1409
        %v1412 = vlaneseq
        %v1413 = vshrl.u32 %v1412, 7
        %v1414 = vsub.s32 1, %v1413
        %v1415 = vrot.slane %v509, %v1414
        %v1416 = vmul.f32 %v1410, %v1415
        %v1417 = vmul.f32 %v1411, %v1415
        %v1418 = vpack.c.bf16 %v1417, %v1416
        %v1419 = vld [vmem:[%s481] sm:$0xf]
        %v1420 = vld [vmem:[%s481 + $0x4] sm:$0xf]
        %v1421 = vld [vmem:[%s481 + $0x8] sm:$0xf]
        %v1422 = vld [vmem:[%s481 + $0xc] sm:$0xf]
        %v1427 = vunpack.c.l.b16 %v1419
        %v1428 = vunpack.c.l.b16 %v1420
        %v1429 = vunpack.c.l.b16 %v1421
        %v1430 = vunpack.c.l.b16 %v1422
        %v1431 = vpack.c.b16 %v1428, %v1427
        %v1432 = vpack.c.b16 %v1430, %v1429
        %v1436 = vsel %vm516, %v1418, 0
        %1438 = vmatprep.subr.bf16.mxu0 0
        %1439 = vmatpush1.bf16.msra.mxu0 %v1431
        %1440 = vmatprep.subr.bf16.mxu0 0
        %1441 = vmatpush1.bf16.msra.mxu0 %v1432
        %1442 = vmatprep.subr.bf16.mxu0 0
        %1443 = vmatpush1.bf16.msra.mxu0 0
        %1444 = vmatprep.subr.bf16.mxu0 0
        %1445 = vmatpush1.bf16.msra.mxu0 0
        %1446 = vmatprep.subr.bf16.mxu0 0
        %1447 = vmatpush1.bf16.msra.mxu0 0
        %1448 = vmatprep.subr.bf16.mxu0 0
        %1449 = vmatpush1.bf16.msra.mxu0 0
        %1450 = vmatprep.subr.bf16.mxu0 0
        %1451 = vmatpush1.bf16.msra.mxu0 0
        %1452 = vmatprep.subr.bf16.mxu0 0
        %1453 = vmatpush1.bf16.msra.mxu0 0
        %1454 = vmatprep.subr.bf16.mxu0 0
        %1455 = vmatpush1.bf16.msra.mxu0 0
        %1456 = vmatprep.subr.bf16.mxu0 0
        %1457 = vmatpush1.bf16.msra.mxu0 0
        %1458 = vmatprep.subr.bf16.mxu0 0
        %1459 = vmatpush1.bf16.msra.mxu0 0
        %1460 = vmatprep.subr.bf16.mxu0 0
        %1461 = vmatpush1.bf16.msra.mxu0 0
        %1462 = vmatprep.subr.bf16.mxu0 0
        %1463 = vmatpush1.bf16.msra.mxu0 0
        %1464 = vmatprep.subr.bf16.mxu0 0
        %1465 = vmatpush1.bf16.msra.mxu0 0
        %1466 = vmatprep.subr.bf16.mxu0 0
        %1467 = vmatpush1.bf16.msra.mxu0 0
        %1468 = vmatprep.subr.bf16.mxu0 0
        %1469 = vmatpush1.bf16.msra.mxu0 0
        %1470 = vmatprep.mubr.bf16.mxu0 0
        %1471 = vmatmul.mubr.bf16.gmra.mrb[0].mxu0 %v1436
        %v1472 = vpop.f32.mrb[0].mxu0
        %v1473 = vadd.f32 0.0, %v1472
        %v1474 = vpop.f32.mrb[0].mxu0
        %v1475 = vpop.f32.mrb[0].mxu0
        %v1476 = vadd.f32 0.0, %v1475
        %v1477 = vpop.f32.mrb[0].mxu0
        %1478 = vdwg.mxu0
        %v1479 = vsub.f32 0.0, %v1473
        %v1480 = vsub.f32 0.0, %v1476
        %v1481 = vmul.f32 %v1479, 1.442695
        %v1482 = vpow.pop %v1481
        %v1483 = vmul.f32 %v1480, 1.442695
        %v1484 = vpow.pop %v1483
        %v1485 = vadd.f32 %v1482, 1.0
        %v1486 = vadd.f32 %v1484, 1.0
        %v1487 = vrcp.pop %v1485
        %v1488 = vmul.f32 1.0, %v1487
        %v1489 = vrcp.pop %v1486
        %v1490 = vmul.f32 1.0, %v1489
        %v1491 = vmul.f32 %v1473, %v1488
        %v1492 = vmul.f32 %v1476, %v1490
        %1495 = vrot.lane.b32.xlu0 %v1473, 64
        %v1496 = vpop.permute.xlu0 %1495
        %1497 = vrot.lane.b32.xlu0 %v1476, 64
        %v1498 = vpop.permute.xlu0 %1497
        %v1501 = vmul.f32 %v1491, %v1496
        %v1502 = vmul.f32 %v1492, %v1498
        %v1503 = vpack.c.bf16 %v1502, %v1501
        %v1504 = vld [vmem:[%s486] sm:$0xf]
        %v1505 = vld [vmem:[%s486 + $0x4] sm:$0xf]
        %v1506 = vld [vmem:[%s486 + $0x8] sm:$0xf]
        %v1507 = vld [vmem:[%s486 + $0xc] sm:$0xf]
        %v1508 = vld [vmem:[%s486 + $0x10] sm:$0xf]
        %v1509 = vld [vmem:[%s486 + $0x14] sm:$0xf]
        %v1510 = vld [vmem:[%s486 + $0x18] sm:$0xf]
        %v1511 = vld [vmem:[%s486 + $0x1c] sm:$0xf]
        %v1520 = vunpack.c.l.b16 %v1504
        %v1521 = vunpack.c.l.b16 %v1505
        %v1522 = vunpack.c.l.b16 %v1506
        %v1523 = vunpack.c.l.b16 %v1507
        %v1524 = vunpack.c.l.b16 %v1508
        %v1525 = vunpack.c.l.b16 %v1509
        %v1526 = vunpack.c.l.b16 %v1510
        %v1527 = vunpack.c.l.b16 %v1511
        %v1528 = vpack.c.b16 %v1521, %v1520
        %v1529 = vpack.c.b16 %v1523, %v1522
        %v1530 = vpack.c.b16 %v1525, %v1524
        %v1531 = vpack.c.b16 %v1527, %v1526
        %vm1536 = vcmask 523264
        %v1538 = vsel %vm1536, %v1503, 0
        %1540 = vmatprep.subr.bf16.mxu0 0
        %1541 = vmatpush1.bf16.msra.mxu0 %v1528
        %1542 = vmatprep.subr.bf16.mxu0 0
        %1543 = vmatpush1.bf16.msra.mxu0 %v1529
        %1544 = vmatprep.subr.bf16.mxu0 0
        %1545 = vmatpush1.bf16.msra.mxu0 %v1530
        %1546 = vmatprep.subr.bf16.mxu0 0
        %1547 = vmatpush1.bf16.msra.mxu0 %v1531
        %1548 = vmatprep.subr.bf16.mxu0 0
        %1549 = vmatpush1.bf16.msra.mxu0 0
        %1550 = vmatprep.subr.bf16.mxu0 0
        %1551 = vmatpush1.bf16.msra.mxu0 0
        %1552 = vmatprep.subr.bf16.mxu0 0
        %1553 = vmatpush1.bf16.msra.mxu0 0
        %1554 = vmatprep.subr.bf16.mxu0 0
        %1555 = vmatpush1.bf16.msra.mxu0 0
        %1556 = vmatprep.subr.bf16.mxu0 0
        %1557 = vmatpush1.bf16.msra.mxu0 0
        %1558 = vmatprep.subr.bf16.mxu0 0
        %1559 = vmatpush1.bf16.msra.mxu0 0
        %1560 = vmatprep.subr.bf16.mxu0 0
        %1561 = vmatpush1.bf16.msra.mxu0 0
        %1562 = vmatprep.subr.bf16.mxu0 0
        %1563 = vmatpush1.bf16.msra.mxu0 0
        %1564 = vmatprep.subr.bf16.mxu0 0
        %1565 = vmatpush1.bf16.msra.mxu0 0
        %1566 = vmatprep.subr.bf16.mxu0 0
        %1567 = vmatpush1.bf16.msra.mxu0 0
        %1568 = vmatprep.subr.bf16.mxu0 0
        %1569 = vmatpush1.bf16.msra.mxu0 0
        %1570 = vmatprep.subr.bf16.mxu0 0
        %1571 = vmatpush1.bf16.msra.mxu0 0
        %1572 = vmatprep.mubr.bf16.mxu0 0
        %1573 = vmatmul.mubr.bf16.gmra.mrb[0].mxu0 %v1538
        %v1574 = vpop.f32.mrb[0].mxu0
        %v1575 = vadd.f32 0.0, %v1574
        %v1576 = vpop.f32.mrb[0].mxu0
        %v1577 = vpop.f32.mrb[0].mxu0
        %v1578 = vadd.f32 0.0, %v1577
        %v1579 = vpop.f32.mrb[0].mxu0
        %1580 = vdwg.mxu0
        %v1581 = vadd.f32 %v1394, %v1575
        %v1582 = vadd.f32 %v1395, %v1578
        %1583 = vst.msk [vmem:[#allocation2] sm:$0xff] %vm516, %v1581
        %1584 = vst.msk [vmem:[#allocation2 + $0x8] sm:$0xff] %vm516, %v1582
        %p1585 = scmp.eq.s32.totalorder %s24, 1
        // Predicated region
        $region81: #{tpu_custom_call.1} parent=59 // pred_check
          %p1586 = pneg %p1585
        $region82: #{tpu_custom_call.1} parent=59 // pred_check_branch
          %1588 = sbr.rel (%p1586) target = $region84
        $region83: #{tpu_custom_call.1} parent=59 // pred_region
          %v1589 = vld [vmem:[%s8] sm:$0x1]
          %v1590 = vmul.f32 %v1581, %v1581
          %v1591 = vmul.f32 %v1582, %v1582
          %v1592 = vsel %vm516, %v1590, 0.0
          %1593 = vadd.xlane.f32.xlu0 %v1592
          %v1594 = vpop.xlane.xlu0 %1593
          %v1595 = vsel %vm516, %v1591, 0.0
          %1596 = vadd.xlane.f32.xlu0 %v1595
          %v1597 = vpop.xlane.xlu0 %1596
          %v1598 = vmul.f32 %v1594, %v523
          %v1599 = vmul.f32 %v1597, %v523
          %v1600 = vadd.f32 %v1598, 1e-06
          %v1601 = vadd.f32 %v1599, 1e-06
          %v1602 = vrsqrt.pop %v1600
          %v1603 = vrsqrt.pop %v1601
          %v1604 = vmul.f32 %v1581, %v1602
          %v1605 = vmul.f32 %v1582, %v1603
          %v1607 = vlaneseq
          %v1608 = vshrl.u32 %v1607, 7
          %v1609 = vsub.s32 0, %v1608
          %v1610 = vrot.slane %v1589, %v1609
          %v1612 = vmul.f32 %v1604, %v1610
          %v1613 = vmul.f32 %v1605, %v1610
          %v1614 = vpack.c.bf16 %v1613, %v1612
          %v1615 = vld [vmem:[%s9] sm:$0xf]
          %v1616 = vld [vmem:[%s9 + $0x4] sm:$0xf]
          %v1617 = vld [vmem:[%s9 + $0x8] sm:$0xf]
          %v1618 = vld [vmem:[%s9 + $0xc] sm:$0xf]
          %v1623 = vunpack.c.l.b16 %v1615
          %v1624 = vunpack.c.l.b16 %v1616
          %v1625 = vunpack.c.l.b16 %v1617
          %v1626 = vunpack.c.l.b16 %v1618
          %v1627 = vpack.c.b16 %v1624, %v1623
          %v1628 = vpack.c.b16 %v1626, %v1625
          %v1632 = vsel %vm516, %v1614, 0
          %1634 = vmatprep.subr.bf16.mxu0 0
          %1635 = vmatpush1.bf16.msra.mxu0 %v1627
          %1636 = vmatprep.subr.bf16.mxu0 0
          %1637 = vmatpush1.bf16.msra.mxu0 %v1628
          %1638 = vmatprep.subr.bf16.mxu0 0
          %1639 = vmatpush1.bf16.msra.mxu0 0
          %1640 = vmatprep.subr.bf16.mxu0 0
          %1641 = vmatpush1.bf16.msra.mxu0 0
          %1642 = vmatprep.subr.bf16.mxu0 0
          %1643 = vmatpush1.bf16.msra.mxu0 0
          %1644 = vmatprep.subr.bf16.mxu0 0
          %1645 = vmatpush1.bf16.msra.mxu0 0
          %1646 = vmatprep.subr.bf16.mxu0 0
          %1647 = vmatpush1.bf16.msra.mxu0 0
          %1648 = vmatprep.subr.bf16.mxu0 0
          %1649 = vmatpush1.bf16.msra.mxu0 0
          %1650 = vmatprep.subr.bf16.mxu0 0
          %1651 = vmatpush1.bf16.msra.mxu0 0
          %1652 = vmatprep.subr.bf16.mxu0 0
          %1653 = vmatpush1.bf16.msra.mxu0 0
          %1654 = vmatprep.subr.bf16.mxu0 0
          %1655 = vmatpush1.bf16.msra.mxu0 0
          %1656 = vmatprep.subr.bf16.mxu0 0
          %1657 = vmatpush1.bf16.msra.mxu0 0
          %1658 = vmatprep.subr.bf16.mxu0 0
          %1659 = vmatpush1.bf16.msra.mxu0 0
          %1660 = vmatprep.subr.bf16.mxu0 0
          %1661 = vmatpush1.bf16.msra.mxu0 0
          %1662 = vmatprep.subr.bf16.mxu0 0
          %1663 = vmatpush1.bf16.msra.mxu0 0
          %1664 = vmatprep.subr.bf16.mxu0 0
          %1665 = vmatpush1.bf16.msra.mxu0 0
          %1666 = vmatprep.mubr.bf16.mxu0 0
          %1667 = vmatmul.mubr.bf16.gmra.mrb[0].mxu0 %v1632
          %v1668 = vpop.f32.mrb[0].mxu0
          %v1669 = vadd.f32 0.0, %v1668
          %v1670 = vpop.f32.mrb[0].mxu0
          %v1671 = vpop.f32.mrb[0].mxu0
          %v1672 = vadd.f32 0.0, %v1671
          %v1673 = vpop.f32.mrb[0].mxu0
          %1674 = vdwg.mxu0
          %1675 = vst.msk [vmem:[#allocation10] sm:$0xff] %vm1536, %v1669
          %1676 = vst.msk [vmem:[#allocation10 + $0x8] sm:$0xff] %vm1536, %v1672
        $region84: #{tpu_custom_call.1} parent=59 // pred_fallthru
          _
        // Predicated region
        $region85: #{tpu_custom_call.1} parent=59 // pred_check
          %p1677 = pneg %p272
        $region86: #{tpu_custom_call.1} parent=59 // pred_check_branch
          %1679 = sbr.rel (%p1677) target = $region88
        $region87: #{tpu_custom_call.1} parent=59 // pred_region
          %s1681 = ssub.s32 256, 256
          %1682 = vsyncadd [#allocation5], %s1681
          %s1683 = sshll.u32 [#allocation10], 4
          %s1684 = int_to_ptr.vmem [resolvable:$true] %s1683
          %1689 = dma.vmem_to_hbm [thread:$0]  %s1684, 256, %s10, [#allocation5], 128, 128, 8
        $region88: #{tpu_custom_call.1} parent=59 // pred_fallthru
          _
        // Predicated region
        $region89: #{tpu_custom_call.1} parent=59 // pred_check
          %p1690 = pneg %p272
        $region90: #{tpu_custom_call.1} parent=59 // pred_check_branch
          %1692 = sbr.rel (%p1690) target = $region92
        $region91: #{tpu_custom_call.1} parent=59 // pred_region
          %1693 = dma.done [#allocation5], 256
        $region92: #{tpu_custom_call.1} parent=59 // pred_fallthru
          _
      $region60: #{tpu_custom_call.1} parent=5 // pred_fallthru
        _
      %p1694 = scmp.le.s32.totalorder 2, %s19
      // Predicated region
      $region93: #{tpu_custom_call.1} parent=5 // pred_check
        %p1695 = pneg %p1694
      $region94: #{tpu_custom_call.1} parent=5 // pred_check_branch
        %1697 = sbr.rel (%p1695) target = $region96
      $region95: #{tpu_custom_call.1} parent=5 // pred_region
        %s1698 = ssub.s32 %s19, 2
      $region96: #{tpu_custom_call.1} parent=5 // pred_fallthru
        _
    $region6: #{tpu_custom_call.1} parent=1 // loop_footer
      %s23 = sadd.s32 1, %s19
    $region7: #{tpu_custom_call.1} parent=1 // loop_footer_branch
      %18 = sbr.rel target = $region3
    $region8: #{tpu_custom_call.1} parent=1 // loop_exit
      _
    %1699 = vsyncpa [#allocation4], 1
    %s1700 = scalar_lea.sflag [#allocation4], 1
    %1701 = vsyncpa %s1700, 1
    %1702 = vsyncpa [#allocation7], 1
    %1703 = vsyncpa [#allocation5], 1
    %s1704 = scalar_lea.sflag [#allocation5], 1
    %1705 = vsyncpa %s1704, 1

</llo_original>
